<compile_context>
chip_gen: v7x
topology: tpu7x:2x2x1
jax: 0.10.0
libtpu: 0.0.40
codegen_flags: <defaults>
</compile_context>

<pallas_src>
import functools

import jax
import jax.numpy as jnp
from jax import lax
from jax.experimental import pallas as pl
from jax.experimental.pallas import tpu as pltpu


_INV_SQRT2 = 0.7071067811865476


def _round_up(x, n):
    return ((x + n - 1) // n) * n


def _gelu_exact(x):
    # torch.nn.functional.gelu default = exact erf-based gelu (f32 input here).
    return 0.5 * x * (1.0 + lax.erf(x * _INV_SQRT2))


def _ffn_kernel(x_ref, w1_ref, w2_ref, b2_ref, w3_ref, b3_ref, o_ref,
                h0_ref, acc_ref):
    k = pl.program_id(1)

    @pl.when(k == 0)
    def _():
        # Dense 1 (no bias): (tm, io) @ (io, reduced_p) -> cached for all k.
        h0 = jnp.dot(x_ref[...], w1_ref[...],
                     preferred_element_type=jnp.float32)
        h0_ref[...] = h0.astype(h0_ref.dtype)
        acc_ref[...] = jnp.zeros_like(acc_ref)

    # Dense 2 hidden block: (tm, reduced_p) @ (reduced_p, tk) + b2[tk], GELU.
    h = jnp.dot(h0_ref[...], w2_ref[...], preferred_element_type=jnp.float32)
    h = _gelu_exact(h + b2_ref[...])
    # intermediate dropout == identity (eval mode)

    # Dense 3 (accumulated over hidden blocks): (tm, tk) @ (tk, io)
    acc_ref[...] += jnp.dot(h.astype(w3_ref.dtype), w3_ref[...],
                            preferred_element_type=jnp.float32)

    @pl.when(k == pl.num_programs(1) - 1)
    def _():
        # output bias + output dropout (identity, eval mode)
        o_ref[...] = (acc_ref[...] + b3_ref[...]).astype(o_ref.dtype)


@functools.lru_cache(maxsize=None)
def _vmem_limit_bytes():
    """Generation-aware VMEM budget: v7x has 64 MiB/TC, v5e/v6e 128 MiB."""
    try:
        cap = int(pltpu.get_tpu_info().vmem_capacity_bytes)
    except Exception:
        cap = 64 * 1024 * 1024
    # Leave ~16 MiB headroom for Mosaic internal scratch; cap large-VMEM gens.
    return int(max(32 * 1024 * 1024, min(cap - 16 * 1024 * 1024,
                                         96 * 1024 * 1024)))


def prepare_ffn_params(w1, w2, b2, w3, b3, *, tile_k=512,
                       compute_dtype=jnp.bfloat16, reduced_multiple=128):
    """One-time weight preprocessing, hoisted out of the per-call forward.

    Inputs are torch nn.Linear layouts:
      w1: (reduced, io)   [no bias]
      w2: (hidden, reduced), b2: (hidden,)
      w3: (io, hidden),      b3: (io,)
    Returns (params dict of device arrays, tile_k).
    """
    reduced, io = w1.shape
    hidden = w2.shape[0]

    # Transpose to (in, out) for x @ W; cast to the MXU-native dtype once.
    w1_t = jnp.asarray(w1, compute_dtype).T          # (io, reduced)
    w2_t = jnp.asarray(w2, compute_dtype).T          # (reduced, hidden)
    w3_t = jnp.asarray(w3, compute_dtype).T          # (hidden, io)
    b2_ = jnp.asarray(b2, jnp.float32).reshape(1, hidden)
    b3_ = jnp.asarray(b3, jnp.float32).reshape(1, io)

    # Pad `reduced` (dense-1 output N / dense-2 contraction K) to a lane-dense
    # multiple so the MXU is not quarter-utilized for small reduced (e.g. 64).
    reduced_p = _round_up(reduced, reduced_multiple)
    if reduced_p != reduced:
        w1_t = jnp.pad(w1_t, ((0, 0), (0, reduced_p - reduced)))
        w2_t = jnp.pad(w2_t, ((0, reduced_p - reduced), (0, 0)))

    # Hidden tile: lane-dense multiple of 128, or the full hidden dim if small.
    if hidden <= max(tile_k, 128):
        tile_k = hidden
    else:
        tile_k = _round_up(min(tile_k, hidden), 128)
    hidden_p = _round_up(hidden, tile_k)
    if hidden_p != hidden:
        # Zero-padded hidden columns contribute exactly zero (padded W3 rows
        # are zero), so no masking is needed.
        w2_t = jnp.pad(w2_t, ((0, 0), (0, hidden_p - hidden)))
        b2_ = jnp.pad(b2_, ((0, 0), (0, hidden_p - hidden)))
        w3_t = jnp.pad(w3_t, ((0, hidden_p - hidden), (0, 0)))

    params = dict(w1_t=w1_t, w2_t=w2_t, b2=b2_, w3_t=w3_t, b3=b3_)
    return params, tile_k


@functools.partial(jax.jit,
                   static_argnames=("tile_k", "tile_m", "compute_dtype"))
def feed_forward(x, w1_t, w2_t, b2, w3_t, b3, *, tile_k, tile_m=256,
                 compute_dtype=jnp.bfloat16):
    """FeedForwardC forward.  Weights must come from prepare_ffn_params."""
    orig_shape = x.shape
    out_dtype = x.dtype
    io = orig_shape[-1]
    reduced_p = w1_t.shape[1]
    hidden_p = w2_t.shape[1]
    assert hidden_p % tile_k == 0, "weights must be pre-padded to tile_k"

    x2d = x.reshape(-1, io).astype(compute_dtype)
    m = x2d.shape[0]

    # Row tile: MXU-friendly, but split small M into >=2 tiles so the
    # "parallel" grid axis keeps both v7x TensorCores busy.
    m_r = _round_up(m, 16)
    if m_r <= tile_m:
        tile_m = _round_up((m_r + 1) // 2, 64) if m_r >= 128 else m_r
    m_pad = _round_up(m, tile_m) - m
    if m_pad:
        x2d = jnp.pad(x2d, ((0, m_pad), (0, 0)))
    m_p = m + m_pad

    grid = (m_p // tile_m, hidden_p // tile_k)

    out2d = pl.pallas_call(
        _ffn_kernel,
        out_shape=jax.ShapeDtypeStruct((m_p, io), out_dtype),
        grid_spec=pltpu.PrefetchScalarGridSpec(
            num_scalar_prefetch=0,
            grid=grid,
            in_specs=[
                pl.BlockSpec((tile_m, io), lambda i, k: (i, 0)),       # x rows
                pl.BlockSpec((io, reduced_p), lambda i, k: (0, 0),     # W1 (grid-constant)
                             pipeline_mode=pl.Buffered(1)),
                pl.BlockSpec((reduced_p, tile_k), lambda i, k: (0, k)),  # W2 cols
                pl.BlockSpec((1, tile_k), lambda i, k: (0, k)),        # b2 block
                pl.BlockSpec((tile_k, io), lambda i, k: (k, 0)),       # W3 rows
                pl.BlockSpec((1, io), lambda i, k: (0, 0),             # b3 (grid-constant)
                             pipeline_mode=pl.Buffered(1)),
            ],
            out_specs=pl.BlockSpec((tile_m, io), lambda i, k: (i, 0)),
            scratch_shapes=[
                pltpu.VMEM((tile_m, reduced_p), compute_dtype),  # cached dense-1
                pltpu.VMEM((tile_m, io), jnp.float32),           # accumulator
            ],
        ),
        compiler_params=pltpu.CompilerParams(
            dimension_semantics=("parallel", "arbitrary"),
            vmem_limit_bytes=_vmem_limit_bytes(),
        ),
    )(x2d, w1_t, w2_t, b2, w3_t, b3)

    if m_pad:
        out2d = out2d[:m]
    return out2d.reshape(orig_shape)


def _reference(x2d, w1_t, w2_t, b2, w3_t, b3, compute_dtype=jnp.bfloat16):
    """Pure-JAX reference with the same mixed precision as the kernel."""
    xc = x2d.astype(compute_dtype)
    h0 = jnp.dot(xc, w1_t.astype(compute_dtype),
                 preferred_element_type=jnp.float32)
    h0 = h0.astype(compute_dtype)
    h = jnp.dot(h0, w2_t.astype(compute_dtype),
                preferred_element_type=jnp.float32)
    h = h + b2.astype(jnp.float32)
    h = 0.5 * h * (1.0 + lax.erf(h * _INV_SQRT2))
    out = jnp.dot(h.astype(compute_dtype), w3_t.astype(compute_dtype),
                  preferred_element_type=jnp.float32)
    return (out + b3.astype(jnp.float32)).astype(x2d.dtype)


if __name__ == "__main__":
    # Small shapes consistent with FeedForwardC:
    #   x: (batch=4, seq=128, io_features=128), intermediate_features=256, t=2
    batch, seq, io_features, intermediate_features, t = 4, 128, 128, 256, 2
    reduced_features = io_features // t

    key = jax.random.PRNGKey(0)
    kx, kw1, kw2, kb2, kw3, kb3 = jax.random.split(key, 6)

    x = jax.random.normal(kx, (batch, seq, io_features), dtype=jnp.float32)

    # torch nn.Linear stores weight as (out, in).
    w1 = jax.random.normal(kw1, (reduced_features, io_features),
                           dtype=jnp.float32) * 0.05          # no bias
    w2 = jax.random.normal(kw2, (intermediate_features, reduced_features),
                           dtype=jnp.float32) * 0.05
    b2 = jax.random.normal(kb2, (intermediate_features,), dtype=jnp.float32) * 0.05
    w3 = jax.random.normal(kw3, (io_features, intermediate_features),
                           dtype=jnp.float32) * 0.05
    b3 = jax.random.normal(kb3, (io_features,), dtype=jnp.float32) * 0.05

    # One-time weight preprocessing (transpose / bf16 cast / padding), hoisted
    # out of the jitted forward.  tile_k=128 exercises the hidden-dim
    # accumulation axis (2 blocks of 128); reduced=64 is padded to 128.
    params, tile_k = prepare_ffn_params(w1, w2, b2, w3, b3, tile_k=128)

    out = feed_forward(x, params["w1_t"], params["w2_t"], params["b2"],
                       params["w3_t"], params["b3"], tile_k=tile_k, tile_m=256)
    out = jax.block_until_ready(out)

    ref = _reference(x.reshape(-1, io_features), w1.T, w2.T, b2, w3.T, b3)
    ref = ref.reshape(x.shape)

    assert out.shape == x.shape
    assert jnp.allclose(out, ref, atol=3e-3, rtol=3e-3), "mismatch vs reference"

    print("KERNEL_OK")
</pallas_src>

<mosaic_0001>
module attributes {stable_mosaic.version = 11 : i64} {
  func.func @_ffn_kernel(%arg0: i32, %arg1: i32, %arg2: memref<256x128xbf16, #tpu.memory_space<vmem>>, %arg3: memref<128x128xbf16, #tpu.memory_space<vmem>>, %arg4: memref<128x128xbf16, #tpu.memory_space<vmem>>, %arg5: memref<1x128xf32, #tpu.memory_space<vmem>>, %arg6: memref<128x128xbf16, #tpu.memory_space<vmem>>, %arg7: memref<1x128xf32, #tpu.memory_space<vmem>>, %arg8: memref<256x128xf32, #tpu.memory_space<vmem>>, %arg9: memref<256x128xbf16, #tpu.memory_space<vmem>>, %arg10: memref<256x128xf32, #tpu.memory_space<vmem>>) attributes {dimension_semantics = [#tpu.dimension_semantics<parallel>, #tpu.dimension_semantics<arbitrary>], iteration_bounds = array<i64: 2, 2>, scalar_prefetch = 0 : i64, scratch_operands = 2 : i64, tpu.core_type = #tpu.core_type<tc>, window_params = [{transform_indices = @transform_0, window_bounds = array<i64: 256, 128>}, {pipeline_mode = #tpu.pipeline_mode<synchronous>, transform_indices = @transform_1, window_bounds = array<i64: 128, 128>}, {transform_indices = @transform_2, window_bounds = array<i64: 128, 128>}, {transform_indices = @transform_3, window_bounds = array<i64: 1, 128>}, {transform_indices = @transform_4, window_bounds = array<i64: 128, 128>}, {pipeline_mode = #tpu.pipeline_mode<synchronous>, transform_indices = @transform_5, window_bounds = array<i64: 1, 128>}, {transform_indices = @transform_6, window_bounds = array<i64: 256, 128>}]} {
    %c0_i32 = arith.constant 0 : i32
    %0 = arith.cmpi eq, %arg1, %c0_i32 : i32
    %1 = arith.extui %0 : i1 to i32
    %c0_i32_0 = arith.constant 0 : i32
    %2 = arith.cmpi ne, %1, %c0_i32_0 : i32
    scf.if %2 {
      %c0_17 = arith.constant 0 : index
      %c0_18 = arith.constant 0 : index
      %26 = vector.load %arg2[%c0_17, %c0_18] : memref<256x128xbf16, #tpu.memory_space<vmem>>, vector<256x128xbf16>
      %c0_19 = arith.constant 0 : index
      %c0_20 = arith.constant 0 : index
      %27 = vector.load %arg3[%c0_19, %c0_20] : memref<128x128xbf16, #tpu.memory_space<vmem>>, vector<128x128xbf16>
      %cst_21 = arith.constant dense<0.000000e+00> : vector<256x128xf32>
      %28 = tpu.matmul %26, %27, %cst_21 {dimension_numbers = #tpu.dot_dimension_numbers<[1], [0], [0], [1], [0, 0, 1, 1], [], []>} : vector<256x128xbf16>, vector<128x128xbf16>, vector<256x128xf32> -> vector<256x128xf32>
      %29 = arith.truncf %28 : vector<256x128xf32> to vector<256x128xbf16>
      %c0_22 = arith.constant 0 : index
      %c0_23 = arith.constant 0 : index
      %30 = vector.load %arg9[%c0_22, %c0_23] : memref<256x128xbf16, #tpu.memory_space<vmem>>, vector<256x128xbf16>
      tpu.vector_store %arg9[%c0_22, %c0_23], %29 {strides = array<i32>} : memref<256x128xbf16, #tpu.memory_space<vmem>>, vector<256x128xbf16>,
      %cst_24 = arith.constant 0.000000e+00 : f32
      %31 = vector.broadcast %cst_24 : f32 to vector<256x128xf32>
      %c0_25 = arith.constant 0 : index
      %c0_26 = arith.constant 0 : index
      %32 = vector.load %arg10[%c0_25, %c0_26] : memref<256x128xf32, #tpu.memory_space<vmem>>, vector<256x128xf32>
      tpu.vector_store %arg10[%c0_25, %c0_26], %31 {strides = array<i32>} : memref<256x128xf32, #tpu.memory_space<vmem>>, vector<256x128xf32>,
    } else {
    }
    %c0 = arith.constant 0 : index
    %c0_1 = arith.constant 0 : index
    %3 = vector.load %arg9[%c0, %c0_1] : memref<256x128xbf16, #tpu.memory_space<vmem>>, vector<256x128xbf16>
    %c0_2 = arith.constant 0 : index
    %c0_3 = arith.constant 0 : index
    %4 = vector.load %arg4[%c0_2, %c0_3] : memref<128x128xbf16, #tpu.memory_space<vmem>>, vector<128x128xbf16>
    %cst = arith.constant dense<0.000000e+00> : vector<256x128xf32>
    %5 = tpu.matmul %3, %4, %cst {dimension_numbers = #tpu.dot_dimension_numbers<[1], [0], [0], [1], [0, 0, 1, 1], [], []>} : vector<256x128xbf16>, vector<128x128xbf16>, vector<256x128xf32> -> vector<256x128xf32>
    %c0_4 = arith.constant 0 : index
    %c0_5 = arith.constant 0 : index
    %6 = vector.load %arg5[%c0_4, %c0_5] : memref<1x128xf32, #tpu.memory_space<vmem>>, vector<1x128xf32>
    %7 = vector.broadcast %6 : vector<1x128xf32> to vector<256x128xf32>
    %8 = arith.addf %5, %7 : vector<256x128xf32>
    %cst_6 = arith.constant 5.000000e-01 : f32
    %9 = vector.broadcast %cst_6 : f32 to vector<256x128xf32>
    %10 = arith.mulf %9, %8 : vector<256x128xf32>
    %cst_7 = arith.constant 0.707106769 : f32
    %11 = vector.broadcast %cst_7 : f32 to vector<256x128xf32>
    %12 = arith.mulf %8, %11 : vector<256x128xf32>
    %13 = math.erf %12 : vector<256x128xf32>
    %cst_8 = arith.constant 1.000000e+00 : f32
    %14 = vector.broadcast %cst_8 : f32 to vector<256x128xf32>
    %15 = arith.addf %14, %13 : vector<256x128xf32>
    %16 = arith.mulf %10, %15 : vector<256x128xf32>
    %c0_9 = arith.constant 0 : index
    %c0_10 = arith.constant 0 : index
    %17 = vector.load %arg10[%c0_9, %c0_10] : memref<256x128xf32, #tpu.memory_space<vmem>>, vector<256x128xf32>
    %18 = arith.truncf %16 : vector<256x128xf32> to vector<256x128xbf16>
    %c0_11 = arith.constant 0 : index
    %c0_12 = arith.constant 0 : index
    %19 = vector.load %arg6[%c0_11, %c0_12] : memref<128x128xbf16, #tpu.memory_space<vmem>>, vector<128x128xbf16>
    %cst_13 = arith.constant dense<0.000000e+00> : vector<256x128xf32>
    %20 = tpu.matmul %18, %19, %cst_13 {dimension_numbers = #tpu.dot_dimension_numbers<[1], [0], [0], [1], [0, 0, 1, 1], [], []>} : vector<256x128xbf16>, vector<128x128xbf16>, vector<256x128xf32> -> vector<256x128xf32>
    %21 = arith.addf %17, %20 : vector<256x128xf32>
    %c0_14 = arith.constant 0 : index
    %c0_15 = arith.constant 0 : index
    %22 = vector.load %arg10[%c0_14, %c0_15] : memref<256x128xf32, #tpu.memory_space<vmem>>, vector<256x128xf32>
    tpu.vector_store %arg10[%c0_14, %c0_15], %21 {strides = array<i32>} : memref<256x128xf32, #tpu.memory_space<vmem>>, vector<256x128xf32>,
    %c1_i32 = arith.constant 1 : i32
    %23 = arith.cmpi eq, %arg1, %c1_i32 : i32
    %24 = arith.extui %23 : i1 to i32
    %c0_i32_16 = arith.constant 0 : i32
    %25 = arith.cmpi ne, %24, %c0_i32_16 : i32
    scf.if %25 {
      %c0_17 = arith.constant 0 : index
      %c0_18 = arith.constant 0 : index
      %26 = vector.load %arg10[%c0_17, %c0_18] : memref<256x128xf32, #tpu.memory_space<vmem>>, vector<256x128xf32>
      %c0_19 = arith.constant 0 : index
      %c0_20 = arith.constant 0 : index
      %27 = vector.load %arg7[%c0_19, %c0_20] : memref<1x128xf32, #tpu.memory_space<vmem>>, vector<1x128xf32>
      %28 = vector.broadcast %27 : vector<1x128xf32> to vector<256x128xf32>
      %29 = arith.addf %26, %28 : vector<256x128xf32>
      %c0_21 = arith.constant 0 : index
      %c0_22 = arith.constant 0 : index
      %30 = vector.load %arg8[%c0_21, %c0_22] : memref<256x128xf32, #tpu.memory_space<vmem>>, vector<256x128xf32>
      tpu.vector_store %arg8[%c0_21, %c0_22], %29 {strides = array<i32>} : memref<256x128xf32, #tpu.memory_space<vmem>>, vector<256x128xf32>,
    } else {
    }
    return
  }
  func.func @transform_0(%arg0: i32, %arg1: i32) -> (i32, i32) {
    %c0_i32 = arith.constant 0 : i32
    %c0_i32_0 = arith.constant 0 : i32
    return %arg0, %c0_i32 : i32, i32
  }
  func.func @transform_1(%arg0: i32, %arg1: i32) -> (i32, i32) {
    %c0_i32 = arith.constant 0 : i32
    %c0_i32_0 = arith.constant 0 : i32
    %c0_i32_1 = arith.constant 0 : i32
    return %c0_i32, %c0_i32_0 : i32, i32
  }
  func.func @transform_2(%arg0: i32, %arg1: i32) -> (i32, i32) {
    %c0_i32 = arith.constant 0 : i32
    %c0_i32_0 = arith.constant 0 : i32
    return %c0_i32, %arg1 : i32, i32
  }
  func.func @transform_3(%arg0: i32, %arg1: i32) -> (i32, i32) {
    %c0_i32 = arith.constant 0 : i32
    %c0_i32_0 = arith.constant 0 : i32
    return %c0_i32, %arg1 : i32, i32
  }
  func.func @transform_4(%arg0: i32, %arg1: i32) -> (i32, i32) {
    %c0_i32 = arith.constant 0 : i32
    %c0_i32_0 = arith.constant 0 : i32
    return %arg1, %c0_i32 : i32, i32
  }
  func.func @transform_5(%arg0: i32, %arg1: i32) -> (i32, i32) {
    %c0_i32 = arith.constant 0 : i32
    %c0_i32_0 = arith.constant 0 : i32
    %c0_i32_1 = arith.constant 0 : i32
    return %c0_i32, %c0_i32_0 : i32, i32
  }
  func.func @transform_6(%arg0: i32, %arg1: i32) -> (i32, i32) {
    %c0_i32 = arith.constant 0 : i32
    %c0_i32_0 = arith.constant 0 : i32
    return %arg0, %c0_i32 : i32, i32
  }
}

</mosaic_0001>

<llo_original>
// kernel: feed_forward.1
$region0: #{feed_forward.1}
  #allocation0 [shape = 'u32[]', space=smem, size = 0x4, offset = 0x4, fixed_abs, tag = 'smem constant byte address 0x4 - core index']
  #allocation1 [shape = 'u32[144,128]{1,0:T(1,128)}', space=vmem, size = 0x12000, scoped, tag = 'internal scratch']
  #allocation2 [shape = 'bf16[256,128]{1,0:T(16,128)(2,1)}', space=vmem, size = 0x10000, scoped, tag = 'scratch operand']
  #allocation3 [shape = 'f32[256,128]{1,0:T(8,128)}', space=vmem, size = 0x20000, scoped, tag = 'scratch operand']
  %s0 = inlined_call_operand.vmem [shape: bf16[512,128], index: 0, kind: input, shape index: {}]
  %s1 = inlined_call_operand.vmem [shape: bf16[128,128], index: 1, kind: input, shape index: {}]
  %s2 = inlined_call_operand.vmem [shape: bf16[128,256], index: 2, kind: input, shape index: {}]
  %s3 = inlined_call_operand.vmem [shape: f32[1,256], index: 3, kind: input, shape index: {}]
  %s4 = inlined_call_operand.vmem [shape: bf16[256,128], index: 4, kind: input, shape index: {}]
  %s5 = inlined_call_operand.vmem [shape: f32[1,128], index: 5, kind: input, shape index: {}]
  %s6 = inlined_call_operand.hbm [shape: f32[512,128], index: 6, kind: output, shape index: {}]
  %s7 = sld [smem:[#allocation0]]
  $region106: #{feed_forward.1} parent=0
    _
  %s9 = ssub.s32 1, %s7
  %s10 = scalar_select 0, %s9, %s7
  $region1: #{feed_forward.1} parent=0
    #allocation4 [shape = 'u8[65536]{0}', space=vmem, size = 0x10000, scoped, tag = 'input window, operand 2']
    #allocation5 [shape = 'u8[262144]{0}', space=vmem, size = 0x40000, scoped, tag = 'output window, operand 0']
    #allocation6 [shape = 's32[2]{0}', space=sflag, size = 0x8, scoped, tag = 'scoped memory for feed_forward.1']
    %11 = vsyncpa [#allocation6], 0
    %s12 = scalar_lea.sflag [#allocation6], 1
    %13 = vsyncpa %s12, 0
    loop: start=0, step=1, limit=6
    $region2: #{feed_forward.1} parent=1 // loop_pre_header
      _
    $region3: #{feed_forward.1} parent=1 // loop_header
      %s15 = sphi 0, %s19
      %p16 = scmp.ge.s32.totalorder %s15, 6
      %s22 = sphi 0, %s34
      %s23 = sphi 0, %s30
      %s24 = sphi 0, %s22
      %s25 = sphi 0, %s23
      %s26 = sphi 0, %s24
      %s27 = sphi 0, %s25
      %s37 = sphi 0, %s39
      %s40 = sphi 0, %s37
      %s41 = sphi 0, %s40
      %s57 = sphi 0, %s41
      %s61 = sphi 0, %s61
      %s63 = sphi 0, %s61
      %s64 = sphi 0, %s63
      %s78 = sphi 0, %s64
      %s84 = sphi 0, %s86
      %s87 = sphi 0, %s84
      %s88 = sphi 0, %s87
      %s104 = sphi 0, %s88
      %s110 = sphi 0, %s112
      %s113 = sphi 0, %s110
      %s114 = sphi 0, %s113
      %s130 = sphi 0, %s114
      %s136 = sphi 0, %s138
      %s139 = sphi 0, %s136
      %s140 = sphi 0, %s139
      %s156 = sphi 0, %s140
      %s160 = sphi 0, %s160
      %s162 = sphi 0, %s160
      %s163 = sphi 0, %s162
      %s177 = sphi 0, %s163
      %s183 = sphi 0, %s185
      %s186 = sphi 0, %s183
      %s187 = sphi 0, %s186
      %s203 = sphi 0, %s187
    $region4: #{feed_forward.1} parent=1 // loop_header_branch
      %18 = sbr.rel (%p16) target = $region8
    $region5: #{feed_forward.1} parent=1 // loop_body
      %s20 = ssub.s32 %s15, 1
      %s21 = ssub.s32 %s15, 2
      %s28 = sadd.s32 1, %s23
      %p29 = scmp.ge.s32.totalorder %s28, 2
      %s30 = scalar_select %p29, 0, %s28
      %s31 = sadd.s32 1, %s22
      %s32 = scalar_select %p29, %s31, %s22
      %p33 = scmp.ge.s32.totalorder %s32, 2
      %s34 = scalar_select %p33, 0, %s32
      %s35 = ssub.s32 %s22, %s34
      %p36 = scmp.eq.s32.totalorder %s35, 0
      %s38 = sadd.s32 %s37, 1
      %s39 = scalar_select %p36, %s37, %s38
      %p42 = pneg %p36
      %p43 = scmp.eq.s32.totalorder %s15, 3
      %p44 = por %p42, %p43
      %p45 = scmp.ne.s32.totalorder %s37, %s40
      %p46 = scmp.eq.s32.totalorder %s15, 0
      %p47 = por %p45, %p46
      %p48 = scmp.ne.s32.totalorder %s37, %s40
      %p49 = scmp.eq.s32.totalorder %s20, 3
      %p50 = por %p48, %p49
      %p51 = scmp.ne.s32.totalorder %s40, %s41
      %p52 = scmp.eq.s32.totalorder %s20, 0
      %p53 = por %p51, %p52
      %p54 = scmp.ne.s32.totalorder %s40, %s41
      %p55 = scmp.eq.s32.totalorder %s21, 3
      %p56 = por %p54, %p55
      %p58 = scmp.ne.s32.totalorder %s41, %s57
      %p59 = scmp.eq.s32.totalorder %s21, 0
      %p60 = por %p58, %p59
      %s62 = sadd.s32 %s61, 1
      %p65 = scmp.eq.s32.totalorder %s15, 3
      %p66 = scmp.ne.s32.totalorder %s61, %s63
      %p67 = scmp.eq.s32.totalorder %s15, 0
      %p68 = por %p66, %p67
      %p69 = scmp.ne.s32.totalorder %s61, %s63
      %p70 = scmp.eq.s32.totalorder %s20, 3
      %p71 = por %p69, %p70
      %p72 = scmp.ne.s32.totalorder %s63, %s64
      %p73 = scmp.eq.s32.totalorder %s20, 0
      %p74 = por %p72, %p73
      %p75 = scmp.ne.s32.totalorder %s63, %s64
      %p76 = scmp.eq.s32.totalorder %s21, 3
      %p77 = por %p75, %p76
      %p79 = scmp.ne.s32.totalorder %s64, %s78
      %p80 = scmp.eq.s32.totalorder %s21, 0
      %p81 = por %p79, %p80
      %s82 = ssub.s32 %s23, %s30
      %p83 = scmp.eq.s32.totalorder %s82, 0
      %s85 = sadd.s32 %s84, 1
      %s86 = scalar_select %p83, %s84, %s85
      %p89 = pneg %p83
      %p90 = scmp.eq.s32.totalorder %s15, 3
      %p91 = por %p89, %p90
      %p92 = scmp.ne.s32.totalorder %s84, %s87
      %p93 = scmp.eq.s32.totalorder %s15, 0
      %p94 = por %p92, %p93
      %p95 = scmp.ne.s32.totalorder %s84, %s87
      %p96 = scmp.eq.s32.totalorder %s20, 3
      %p97 = por %p95, %p96
      %p98 = scmp.ne.s32.totalorder %s87, %s88
      %p99 = scmp.eq.s32.totalorder %s20, 0
      %p100 = por %p98, %p99
      %p101 = scmp.ne.s32.totalorder %s87, %s88
      %p102 = scmp.eq.s32.totalorder %s21, 3
      %p103 = por %p101, %p102
      %p105 = scmp.ne.s32.totalorder %s88, %s104
      %p106 = scmp.eq.s32.totalorder %s21, 0
      %p107 = por %p105, %p106
      %s108 = ssub.s32 %s23, %s30
      %p109 = scmp.eq.s32.totalorder %s108, 0
      %s111 = sadd.s32 %s110, 1
      %s112 = scalar_select %p109, %s110, %s111
      %p115 = pneg %p109
      %p116 = scmp.eq.s32.totalorder %s15, 3
      %p117 = por %p115, %p116
      %p118 = scmp.ne.s32.totalorder %s110, %s113
      %p119 = scmp.eq.s32.totalorder %s15, 0
      %p120 = por %p118, %p119
      %p121 = scmp.ne.s32.totalorder %s110, %s113
      %p122 = scmp.eq.s32.totalorder %s20, 3
      %p123 = por %p121, %p122
      %p124 = scmp.ne.s32.totalorder %s113, %s114
      %p125 = scmp.eq.s32.totalorder %s20, 0
      %p126 = por %p124, %p125
      %p127 = scmp.ne.s32.totalorder %s113, %s114
      %p128 = scmp.eq.s32.totalorder %s21, 3
      %p129 = por %p127, %p128
      %p131 = scmp.ne.s32.totalorder %s114, %s130
      %p132 = scmp.eq.s32.totalorder %s21, 0
      %p133 = por %p131, %p132
      %s134 = ssub.s32 %s23, %s30
      %p135 = scmp.eq.s32.totalorder %s134, 0
      %s137 = sadd.s32 %s136, 1
      %s138 = scalar_select %p135, %s136, %s137
      %p141 = pneg %p135
      %p142 = scmp.eq.s32.totalorder %s15, 3
      %p143 = por %p141, %p142
      %p144 = scmp.ne.s32.totalorder %s136, %s139
      %p145 = scmp.eq.s32.totalorder %s15, 0
      %p146 = por %p144, %p145
      %p147 = scmp.ne.s32.totalorder %s136, %s139
      %p148 = scmp.eq.s32.totalorder %s20, 3
      %p149 = por %p147, %p148
      %p150 = scmp.ne.s32.totalorder %s139, %s140
      %p151 = scmp.eq.s32.totalorder %s20, 0
      %p152 = por %p150, %p151
      %p153 = scmp.ne.s32.totalorder %s139, %s140
      %p154 = scmp.eq.s32.totalorder %s21, 3
      %p155 = por %p153, %p154
      %p157 = scmp.ne.s32.totalorder %s140, %s156
      %p158 = scmp.eq.s32.totalorder %s21, 0
      %p159 = por %p157, %p158
      %s161 = sadd.s32 %s160, 1
      %p164 = scmp.eq.s32.totalorder %s15, 3
      %p165 = scmp.ne.s32.totalorder %s160, %s162
      %p166 = scmp.eq.s32.totalorder %s15, 0
      %p167 = por %p165, %p166
      %p168 = scmp.ne.s32.totalorder %s160, %s162
      %p169 = scmp.eq.s32.totalorder %s20, 3
      %p170 = por %p168, %p169
      %p171 = scmp.ne.s32.totalorder %s162, %s163
      %p172 = scmp.eq.s32.totalorder %s20, 0
      %p173 = por %p171, %p172
      %p174 = scmp.ne.s32.totalorder %s162, %s163
      %p175 = scmp.eq.s32.totalorder %s21, 3
      %p176 = por %p174, %p175
      %p178 = scmp.ne.s32.totalorder %s163, %s177
      %p179 = scmp.eq.s32.totalorder %s21, 0
      %p180 = por %p178, %p179
      %s181 = ssub.s32 %s22, %s34
      %p182 = scmp.eq.s32.totalorder %s181, 0
      %s184 = sadd.s32 %s183, 1
      %s185 = scalar_select %p182, %s183, %s184
      %p188 = pneg %p182
      %p189 = scmp.eq.s32.totalorder %s15, 3
      %p190 = por %p188, %p189
      %p191 = scmp.ne.s32.totalorder %s183, %s186
      %p192 = scmp.eq.s32.totalorder %s15, 0
      %p193 = por %p191, %p192
      %p194 = scmp.ne.s32.totalorder %s183, %s186
      %p195 = scmp.eq.s32.totalorder %s20, 3
      %p196 = por %p194, %p195
      %p197 = scmp.ne.s32.totalorder %s186, %s187
      %p198 = scmp.eq.s32.totalorder %s20, 0
      %p199 = por %p197, %p198
      %p200 = scmp.ne.s32.totalorder %s186, %s187
      %p201 = scmp.eq.s32.totalorder %s21, 3
      %p202 = por %p200, %p201
      %p204 = scmp.ne.s32.totalorder %s187, %s203
      %p205 = scmp.eq.s32.totalorder %s21, 0
      %p206 = por %p204, %p205
      %p207 = scmp.le.s32.totalorder 1, %s15
      %p208 = scmp.lt.s32.totalorder %s15, 5
      %p209 = pnand %p207, %p208
      %p210 = pneg %p209
      // Predicated region
      $region9: #{feed_forward.1} parent=5 // pred_check
        _
      $region10: #{feed_forward.1} parent=5 // pred_check_branch
        %212 = sbr.rel (%p209) target = $region12
      $region11: #{feed_forward.1} parent=5 // pred_region
        %s213 = ssub.s32 %s15, 1
        // Predicated region
        $region13: #{feed_forward.1} parent=11 // pred_check
          %p214 = pneg %p74
        $region14: #{feed_forward.1} parent=11 // pred_check_branch
          %216 = sbr.rel (%p214) target = $region16
        $region15: #{feed_forward.1} parent=11 // pred_region
          _
        $region16: #{feed_forward.1} parent=11 // pred_fallthru
          _
        // Predicated region
        $region17: #{feed_forward.1} parent=11 // pred_check
          %p217 = pneg %p173
        $region18: #{feed_forward.1} parent=11 // pred_check_branch
          %219 = sbr.rel (%p217) target = $region20
        $region19: #{feed_forward.1} parent=11 // pred_region
          _
        $region20: #{feed_forward.1} parent=11 // pred_fallthru
          _
      $region12: #{feed_forward.1} parent=5 // pred_fallthru
        _
      %p220 = scmp.lt.s32.totalorder %s15, 4
      // Predicated region
      $region21: #{feed_forward.1} parent=5 // pred_check
        %p221 = pneg %p220
      $region22: #{feed_forward.1} parent=5 // pred_check_branch
        %223 = sbr.rel (%p221) target = $region24
      $region23: #{feed_forward.1} parent=5 // pred_region
        // Predicated region
        $region25: #{feed_forward.1} parent=23 // pred_check
          %p224 = pneg %p47
        $region26: #{feed_forward.1} parent=23 // pred_check_branch
          %226 = sbr.rel (%p224) target = $region28
        $region27: #{feed_forward.1} parent=23 // pred_region
          %s227 = smul.u32 32, %s22
          %p228 = scmp.lt.s32.totalorder %s227, 63
          %s229 = scalar_select %p228, %s227, 63
          %s230 = smul.addr %s229, 4
          %s231 = scalar_lea.vmem %s0, %s230
          %s232 = smul.u32 32, %s22
        $region28: #{feed_forward.1} parent=23 // pred_fallthru
          _
        // Predicated region
        $region29: #{feed_forward.1} parent=23 // pred_check
          %p233 = pneg %p94
        $region30: #{feed_forward.1} parent=23 // pred_check_branch
          %235 = sbr.rel (%p233) target = $region32
        $region31: #{feed_forward.1} parent=23 // pred_region
          %s236 = sand.u32 %s84, 1
          %s237 = sand.u32 %s84, 1
          %s238 = smul.addr %s237, 64
          %s239 = scalar_lea.vmem [#allocation4], %s238
          %s240 = smul.addr %s23, 4
          %s241 = scalar_lea.vmem %s2, %s240
          // Predicated region
          $region33: #{feed_forward.1} parent=31 // pred_check
            _
          $region34: #{feed_forward.1} parent=31 // pred_check_branch
            %243 = sbr.rel (0) target = $region36
          $region35: #{feed_forward.1} parent=31 // pred_region
            // Predicated region
            $region37: #{feed_forward.1} parent=35 // pred_check
              _
            $region38: #{feed_forward.1} parent=35 // pred_check_branch
              %245 = sbr.rel target = $region40
            $region39: #{feed_forward.1} parent=35 // pred_region
              // Predicated region
              $region52: #{feed_forward.1} parent=39 // pred_check
                _
              $region53: #{feed_forward.1} parent=39 // pred_check_branch
                %290 = sbr.rel (0) target = $region55
              $region54: #{feed_forward.1} parent=39 // pred_region
                loop: start=0, step=1, limit=1
                $region56: #{feed_forward.1} parent=54 // loop_pre_header
                  _
                $region57: #{feed_forward.1} parent=54 // loop_header
                  %s292 = sphi 0, %s296
                  %p293 = scmp.ge.s32.totalorder %s292, 1
                  %s297 = sphi %s241, %s241
                  %s298 = sphi %s239, %s239
                $region58: #{feed_forward.1} parent=54 // loop_header_branch
                  %295 = sbr.rel (%p293) target = $region62
                $region59: #{feed_forward.1} parent=54 // loop_body
                  _
                $region60: #{feed_forward.1} parent=54 // loop_footer
                  %s296 = sadd.s32 1, %s292
                $region61: #{feed_forward.1} parent=54 // loop_footer_branch
                  %291 = sbr.rel target = $region57
                $region62: #{feed_forward.1} parent=54 // loop_exit
                  _
                loop: start=0, step=1, limit=1
                $region63: #{feed_forward.1} parent=54 // loop_pre_header
                  _
                $region64: #{feed_forward.1} parent=54 // loop_header
                  %s301 = sphi 0, %s305
                  %p302 = scmp.ge.s32.totalorder %s301, 1
                  %s306 = sphi %s241, %s241
                  %s307 = sphi %s239, %s239
                $region65: #{feed_forward.1} parent=54 // loop_header_branch
                  %304 = sbr.rel (%p302) target = $region69
                $region66: #{feed_forward.1} parent=54 // loop_body
                  %v308 = vld [vmem:[%s306] sm:$0xf]
                  %309 = vst [vmem:[%s307] sm:$0xf] %v308
                  %v310 = vld [vmem:[%s306 + $0x8] sm:$0xf]
                  %311 = vst [vmem:[%s307 + $0x4] sm:$0xf] %v310
                  %v312 = vld [vmem:[%s306 + $0x10] sm:$0xf]
                  %313 = vst [vmem:[%s307 + $0x8] sm:$0xf] %v312
                  %v314 = vld [vmem:[%s306 + $0x18] sm:$0xf]
                  %315 = vst [vmem:[%s307 + $0xc] sm:$0xf] %v314
                  %v316 = vld [vmem:[%s306 + $0x20] sm:$0xf]
                  %317 = vst [vmem:[%s307 + $0x10] sm:$0xf] %v316
                  %v318 = vld [vmem:[%s306 + $0x28] sm:$0xf]
                  %319 = vst [vmem:[%s307 + $0x14] sm:$0xf] %v318
                  %v320 = vld [vmem:[%s306 + $0x30] sm:$0xf]
                  %321 = vst [vmem:[%s307 + $0x18] sm:$0xf] %v320
                  %v322 = vld [vmem:[%s306 + $0x38] sm:$0xf]
                  %323 = vst [vmem:[%s307 + $0x1c] sm:$0xf] %v322
                  %v324 = vld [vmem:[%s306 + $0x40] sm:$0xf]
                  %325 = vst [vmem:[%s307 + $0x20] sm:$0xf] %v324
                  %v326 = vld [vmem:[%s306 + $0x48] sm:$0xf]
                  %327 = vst [vmem:[%s307 + $0x24] sm:$0xf] %v326
                  %v328 = vld [vmem:[%s306 + $0x50] sm:$0xf]
                  %329 = vst [vmem:[%s307 + $0x28] sm:$0xf] %v328
                  %v330 = vld [vmem:[%s306 + $0x58] sm:$0xf]
                  %331 = vst [vmem:[%s307 + $0x2c] sm:$0xf] %v330
                  %v332 = vld [vmem:[%s306 + $0x60] sm:$0xf]
                  %333 = vst [vmem:[%s307 + $0x30] sm:$0xf] %v332
                  %v334 = vld [vmem:[%s306 + $0x68] sm:$0xf]
                  %335 = vst [vmem:[%s307 + $0x34] sm:$0xf] %v334
                  %v336 = vld [vmem:[%s306 + $0x70] sm:$0xf]
                  %337 = vst [vmem:[%s307 + $0x38] sm:$0xf] %v336
                  %v338 = vld [vmem:[%s306 + $0x78] sm:$0xf]
                  %339 = vst [vmem:[%s307 + $0x3c] sm:$0xf] %v338
                $region67: #{feed_forward.1} parent=54 // loop_footer
                  %s305 = sadd.s32 1, %s301
                $region68: #{feed_forward.1} parent=54 // loop_footer_branch
                  %300 = sbr.rel target = $region64
                $region69: #{feed_forward.1} parent=54 // loop_exit
                  _
              $region55: #{feed_forward.1} parent=39 // pred_fallthru
                _
            $region40: #{feed_forward.1} parent=35 // pred_fallthru
              _
            // Predicated region
            $region41: #{feed_forward.1} parent=35 // pred_check
              _
            $region42: #{feed_forward.1} parent=35 // pred_check_branch
              %247 = sbr.rel (0) target = $region44
            $region43: #{feed_forward.1} parent=35 // pred_region
              loop: start=0, step=1, limit=1
              $region45: #{feed_forward.1} parent=43 // loop_pre_header
                _
              $region46: #{feed_forward.1} parent=43 // loop_header
                %s250 = sphi 0, %s254
                %p251 = scmp.ge.s32.totalorder %s250, 1
                %s255 = sphi %s241, %s241
                %s256 = sphi %s239, %s239
              $region47: #{feed_forward.1} parent=43 // loop_header_branch
                %253 = sbr.rel (%p251) target = $region51
              $region48: #{feed_forward.1} parent=43 // loop_body
                %v257 = vld [vmem:[%s255] sm:$0xf]
                %258 = vst [vmem:[%s256] sm:$0xf] %v257
                %v259 = vld [vmem:[%s255 + $0x8] sm:$0xf]
                %260 = vst [vmem:[%s256 + $0x4] sm:$0xf] %v259
                %v261 = vld [vmem:[%s255 + $0x10] sm:$0xf]
                %262 = vst [vmem:[%s256 + $0x8] sm:$0xf] %v261
                %v263 = vld [vmem:[%s255 + $0x18] sm:$0xf]
                %264 = vst [vmem:[%s256 + $0xc] sm:$0xf] %v263
                %v265 = vld [vmem:[%s255 + $0x20] sm:$0xf]
                %266 = vst [vmem:[%s256 + $0x10] sm:$0xf] %v265
                %v267 = vld [vmem:[%s255 + $0x28] sm:$0xf]
                %268 = vst [vmem:[%s256 + $0x14] sm:$0xf] %v267
                %v269 = vld [vmem:[%s255 + $0x30] sm:$0xf]
                %270 = vst [vmem:[%s256 + $0x18] sm:$0xf] %v269
                %v271 = vld [vmem:[%s255 + $0x38] sm:$0xf]
                %272 = vst [vmem:[%s256 + $0x1c] sm:$0xf] %v271
                %v273 = vld [vmem:[%s255 + $0x40] sm:$0xf]
                %274 = vst [vmem:[%s256 + $0x20] sm:$0xf] %v273
                %v275 = vld [vmem:[%s255 + $0x48] sm:$0xf]
                %276 = vst [vmem:[%s256 + $0x24] sm:$0xf] %v275
                %v277 = vld [vmem:[%s255 + $0x50] sm:$0xf]
                %278 = vst [vmem:[%s256 + $0x28] sm:$0xf] %v277
                %v279 = vld [vmem:[%s255 + $0x58] sm:$0xf]
                %280 = vst [vmem:[%s256 + $0x2c] sm:$0xf] %v279
                %v281 = vld [vmem:[%s255 + $0x60] sm:$0xf]
                %282 = vst [vmem:[%s256 + $0x30] sm:$0xf] %v281
                %v283 = vld [vmem:[%s255 + $0x68] sm:$0xf]
                %284 = vst [vmem:[%s256 + $0x34] sm:$0xf] %v283
                %v285 = vld [vmem:[%s255 + $0x70] sm:$0xf]
                %286 = vst [vmem:[%s256 + $0x38] sm:$0xf] %v285
                %v287 = vld [vmem:[%s255 + $0x78] sm:$0xf]
                %288 = vst [vmem:[%s256 + $0x3c] sm:$0xf] %v287
              $region49: #{feed_forward.1} parent=43 // loop_footer
                %s254 = sadd.s32 1, %s250
              $region50: #{feed_forward.1} parent=43 // loop_footer_branch
                %249 = sbr.rel target = $region46
              $region51: #{feed_forward.1} parent=43 // loop_exit
                _
            $region44: #{feed_forward.1} parent=35 // pred_fallthru
              _
          $region36: #{feed_forward.1} parent=31 // pred_fallthru
            _
          %340 = vnop
        $region32: #{feed_forward.1} parent=23 // pred_fallthru
          _
        // Predicated region
        $region70: #{feed_forward.1} parent=23 // pred_check
          %p341 = pneg %p120
        $region71: #{feed_forward.1} parent=23 // pred_check_branch
          %343 = sbr.rel (%p341) target = $region73
        $region72: #{feed_forward.1} parent=23 // pred_region
          %p344 = scmp.lt.s32.totalorder %s23, 1
          %s345 = scalar_select %p344, %s23, 1
          %s346 = scalar_lea.vmem %s3, %s345
        $region73: #{feed_forward.1} parent=23 // pred_fallthru
          _
        // Predicated region
        $region74: #{feed_forward.1} parent=23 // pred_check
          %p347 = pneg %p146
        $region75: #{feed_forward.1} parent=23 // pred_check_branch
          %349 = sbr.rel (%p347) target = $region77
        $region76: #{feed_forward.1} parent=23 // pred_region
          %s350 = smul.u32 16, %s23
          %p351 = scmp.lt.s32.totalorder %s350, 31
          %s352 = scalar_select %p351, %s350, 31
          %s353 = smul.addr %s352, 4
          %s354 = scalar_lea.vmem %s4, %s353
          %s355 = smul.u32 16, %s23
        $region77: #{feed_forward.1} parent=23 // pred_fallthru
          _
      $region24: #{feed_forward.1} parent=5 // pred_fallthru
        _
      %p356 = scmp.le.s32.totalorder 1, %s15
      %p357 = scmp.lt.s32.totalorder %s15, 5
      %p358 = pnand %p356, %p357
      %p359 = pneg %p358
      // Predicated region
      $region78: #{feed_forward.1} parent=5 // pred_check
        _
      $region79: #{feed_forward.1} parent=5 // pred_check_branch
        %361 = sbr.rel (%p358) target = $region81
      $region80: #{feed_forward.1} parent=5 // pred_region
        %s362 = ssub.s32 %s15, 1
        %s363 = sand.u32 %s87, 1
        %s364 = sand.u32 %s87, 1
        %s365 = smul.addr %s364, 64
        %s366 = scalar_lea.vmem [#allocation4], %s365
        // Predicated region
        $region82: #{feed_forward.1} parent=80 // pred_check
          %p367 = pneg %p100
        $region83: #{feed_forward.1} parent=80 // pred_check_branch
          %369 = sbr.rel (%p367) target = $region85
        $region84: #{feed_forward.1} parent=80 // pred_region
          _
        $region85: #{feed_forward.1} parent=80 // pred_fallthru
          _
        %s370 = smul.u32 32, %s24
        %p371 = scmp.lt.s32.totalorder %s370, 63
        %s372 = scalar_select %p371, %s370, 63
        %s373 = smul.addr %s372, 4
        %s374 = scalar_lea.vmem %s0, %s373
        %p375 = pneg %p53
        %p376 = pneg %p50
        %p377 = pneg %p74
        %p378 = pneg %p71
        %s379 = sand.u32 %s87, 1
        %s380 = sand.u32 %s87, 1
        %s381 = smul.addr %s380, 64
        %s382 = scalar_lea.vmem [#allocation4], %s381
        %p383 = pneg %p100
        %p384 = pneg %p97
        %p385 = scmp.lt.s32.totalorder %s25, 1
        %s386 = scalar_select %p385, %s25, 1
        %s387 = scalar_lea.vmem %s3, %s386
        %p388 = pneg %p126
        %p389 = pneg %p123
        %s390 = smul.u32 16, %s25
        %p391 = scmp.lt.s32.totalorder %s390, 31
        %s392 = scalar_select %p391, %s390, 31
        %s393 = smul.addr %s392, 4
        %s394 = scalar_lea.vmem %s4, %s393
        %p395 = pneg %p152
        %p396 = pneg %p149
        %p397 = pneg %p173
        %p398 = pneg %p170
        %p399 = pneg %p199
        %p400 = pneg %p196
        %s401 = sand.u32 %s186, 1
        %s402 = scalar_lea.sflag [#allocation6], %s401
        %s403 = sand.u32 %s186, 1
        %s404 = smul.addr %s403, 256
        %s405 = scalar_lea.vmem [#allocation5], %s404
        %s406 = smul.u32 32, %s24
        %p407 = scmp.lt.s32.totalorder %s406, 63
        %s408 = scalar_select %p407, %s406, 63
        %s409 = smul.addr %s408, 4
        %s410 = scalar_lea.vmem %s0, %s409
        %s411 = smul.u32 32, %s24
        %p412 = scmp.lt.s32.totalorder %s25, 1
        %s413 = scalar_select %p412, %s25, 1
        %s414 = scalar_lea.vmem %s3, %s413
        %s415 = smul.u32 16, %s25
        %p416 = scmp.lt.s32.totalorder %s415, 31
        %s417 = scalar_select %p416, %s415, 31
        %s418 = smul.addr %s417, 4
        %s419 = scalar_lea.vmem %s4, %s418
        %s420 = smul.u32 16, %s25
        %s421 = smul.u32 32, %s24
        %p423 = scmp.eq.s32.totalorder %s25, 0
        // Predicated region
        $region86: #{feed_forward.1} parent=80 // pred_check
          %p424 = pneg %p423
        $region87: #{feed_forward.1} parent=80 // pred_check_branch
          %426 = sbr.rel (%p424) target = $region89
        $region88: #{feed_forward.1} parent=80 // pred_region
          %v427 = vld [vmem:[%s410] sm:$0xf]
          %v428 = vld [vmem:[%s410 + $0x4] sm:$0xf]
          %v429 = vld [vmem:[%s410 + $0x8] sm:$0xf]
          %v430 = vld [vmem:[%s410 + $0xc] sm:$0xf]
          %v431 = vld [vmem:[%s410 + $0x10] sm:$0xf]
          %v432 = vld [vmem:[%s410 + $0x14] sm:$0xf]
          %v433 = vld [vmem:[%s410 + $0x18] sm:$0xf]
          %v434 = vld [vmem:[%s410 + $0x1c] sm:$0xf]
          %v435 = vld [vmem:[%s410 + $0x20] sm:$0xf]
          %v436 = vld [vmem:[%s410 + $0x24] sm:$0xf]
          %v437 = vld [vmem:[%s410 + $0x28] sm:$0xf]
          %v438 = vld [vmem:[%s410 + $0x2c] sm:$0xf]
          %v439 = vld [vmem:[%s410 + $0x30] sm:$0xf]
          %v440 = vld [vmem:[%s410 + $0x34] sm:$0xf]
          %v441 = vld [vmem:[%s410 + $0x38] sm:$0xf]
          %v442 = vld [vmem:[%s410 + $0x3c] sm:$0xf]
          %v443 = vld [vmem:[%s410 + $0x40] sm:$0xf]
          %v444 = vld [vmem:[%s410 + $0x44] sm:$0xf]
          %v445 = vld [vmem:[%s410 + $0x48] sm:$0xf]
          %v446 = vld [vmem:[%s410 + $0x4c] sm:$0xf]
          %v447 = vld [vmem:[%s410 + $0x50] sm:$0xf]
          %v448 = vld [vmem:[%s410 + $0x54] sm:$0xf]
          %v449 = vld [vmem:[%s410 + $0x58] sm:$0xf]
          %v450 = vld [vmem:[%s410 + $0x5c] sm:$0xf]
          %v451 = vld [vmem:[%s410 + $0x60] sm:$0xf]
          %v452 = vld [vmem:[%s410 + $0x64] sm:$0xf]
          %v453 = vld [vmem:[%s410 + $0x68] sm:$0xf]
          %v454 = vld [vmem:[%s410 + $0x6c] sm:$0xf]
          %v455 = vld [vmem:[%s410 + $0x70] sm:$0xf]
          %v456 = vld [vmem:[%s410 + $0x74] sm:$0xf]
          %v457 = vld [vmem:[%s410 + $0x78] sm:$0xf]
          %v458 = vld [vmem:[%s410 + $0x7c] sm:$0xf]
          %v459 = vld [vmem:[%s1] sm:$0xf]
          %v460 = vld [vmem:[%s1 + $0x4] sm:$0xf]
          %v461 = vld [vmem:[%s1 + $0x8] sm:$0xf]
          %v462 = vld [vmem:[%s1 + $0xc] sm:$0xf]
          %v463 = vld [vmem:[%s1 + $0x10] sm:$0xf]
          %v464 = vld [vmem:[%s1 + $0x14] sm:$0xf]
          %v465 = vld [vmem:[%s1 + $0x18] sm:$0xf]
          %v466 = vld [vmem:[%s1 + $0x1c] sm:$0xf]
          %v467 = vld [vmem:[%s1 + $0x20] sm:$0xf]
          %v468 = vld [vmem:[%s1 + $0x24] sm:$0xf]
          %v469 = vld [vmem:[%s1 + $0x28] sm:$0xf]
          %v470 = vld [vmem:[%s1 + $0x2c] sm:$0xf]
          %v471 = vld [vmem:[%s1 + $0x30] sm:$0xf]
          %v472 = vld [vmem:[%s1 + $0x34] sm:$0xf]
          %v473 = vld [vmem:[%s1 + $0x38] sm:$0xf]
          %v474 = vld [vmem:[%s1 + $0x3c] sm:$0xf]
          %v507 = vunpack.c.l.b16 %v427
          %v508 = vunpack.c.l.b16 %v428
          %v509 = vunpack.c.l.b16 %v429
          %v510 = vunpack.c.l.b16 %v430
          %v511 = vunpack.c.l.b16 %v431
          %v512 = vunpack.c.l.b16 %v432
          %v513 = vunpack.c.l.b16 %v433
          %v514 = vunpack.c.l.b16 %v434
          %v515 = vunpack.c.l.b16 %v435
          %v516 = vunpack.c.l.b16 %v436
          %v517 = vunpack.c.l.b16 %v437
          %v518 = vunpack.c.l.b16 %v438
          %v519 = vunpack.c.l.b16 %v439
          %v520 = vunpack.c.l.b16 %v440
          %v521 = vunpack.c.l.b16 %v441
          %v522 = vunpack.c.l.b16 %v442
          %v523 = vunpack.c.l.b16 %v443
          %v524 = vunpack.c.l.b16 %v444
          %v525 = vunpack.c.l.b16 %v445
          %v526 = vunpack.c.l.b16 %v446
          %v527 = vunpack.c.l.b16 %v447
          %v528 = vunpack.c.l.b16 %v448
          %v529 = vunpack.c.l.b16 %v449
          %v530 = vunpack.c.l.b16 %v450
          %v531 = vunpack.c.l.b16 %v451
          %v532 = vunpack.c.l.b16 %v452
          %v533 = vunpack.c.l.b16 %v453
          %v534 = vunpack.c.l.b16 %v454
          %v535 = vunpack.c.l.b16 %v455
          %v536 = vunpack.c.l.b16 %v456
          %v537 = vunpack.c.l.b16 %v457
          %v538 = vunpack.c.l.b16 %v458
          %v539 = vpack.c.b16 %v508, %v507
          %v540 = vpack.c.b16 %v510, %v509
          %v541 = vpack.c.b16 %v512, %v511
          %v542 = vpack.c.b16 %v514, %v513
          %v543 = vpack.c.b16 %v516, %v515
          %v544 = vpack.c.b16 %v518, %v517
          %v545 = vpack.c.b16 %v520, %v519
          %v546 = vpack.c.b16 %v522, %v521
          %v547 = vpack.c.b16 %v524, %v523
          %v548 = vpack.c.b16 %v526, %v525
          %v549 = vpack.c.b16 %v528, %v527
          %v550 = vpack.c.b16 %v530, %v529
          %v551 = vpack.c.b16 %v532, %v531
          %v552 = vpack.c.b16 %v534, %v533
          %v553 = vpack.c.b16 %v536, %v535
          %v554 = vpack.c.b16 %v538, %v537
          %v587 = vunpack.c.l.b16 %v459
          %v588 = vunpack.c.l.b16 %v460
          %v589 = vunpack.c.l.b16 %v461
          %v590 = vunpack.c.l.b16 %v462
          %v591 = vunpack.c.l.b16 %v463
          %v592 = vunpack.c.l.b16 %v464
          %v593 = vunpack.c.l.b16 %v465
          %v594 = vunpack.c.l.b16 %v466
          %v595 = vunpack.c.l.b16 %v467
          %v596 = vunpack.c.l.b16 %v468
          %v597 = vunpack.c.l.b16 %v469
          %v598 = vunpack.c.l.b16 %v470
          %v599 = vunpack.c.l.b16 %v471
          %v600 = vunpack.c.l.b16 %v472
          %v601 = vunpack.c.l.b16 %v473
          %v602 = vunpack.c.l.b16 %v474
          %v603 = vpack.c.b16 %v588, %v587
          %v604 = vpack.c.b16 %v590, %v589
          %v605 = vpack.c.b16 %v592, %v591
          %v606 = vpack.c.b16 %v594, %v593
          %v607 = vpack.c.b16 %v596, %v595
          %v608 = vpack.c.b16 %v598, %v597
          %v609 = vpack.c.b16 %v600, %v599
          %v610 = vpack.c.b16 %v602, %v601
          %619 = vmatprep.subr.bf16.mxu0 0
          %620 = vmatpush1.bf16.msra.mxu0 %v603
          %621 = vmatprep.subr.bf16.mxu0 0
          %622 = vmatpush1.bf16.msra.mxu0 %v604
          %623 = vmatprep.subr.bf16.mxu0 0
          %624 = vmatpush1.bf16.msra.mxu0 %v605
          %625 = vmatprep.subr.bf16.mxu0 0
          %626 = vmatpush1.bf16.msra.mxu0 %v606
          %627 = vmatprep.subr.bf16.mxu0 0
          %628 = vmatpush1.bf16.msra.mxu0 %v607
          %629 = vmatprep.subr.bf16.mxu0 0
          %630 = vmatpush1.bf16.msra.mxu0 %v608
          %631 = vmatprep.subr.bf16.mxu0 0
          %632 = vmatpush1.bf16.msra.mxu0 %v609
          %633 = vmatprep.subr.bf16.mxu0 0
          %634 = vmatpush1.bf16.msra.mxu0 %v610
          %635 = vmatprep.subr.bf16.mxu0 0
          %636 = vmatpush1.bf16.msra.mxu0 0
          %637 = vmatprep.subr.bf16.mxu0 0
          %638 = vmatpush1.bf16.msra.mxu0 0
          %639 = vmatprep.subr.bf16.mxu0 0
          %640 = vmatpush1.bf16.msra.mxu0 0
          %641 = vmatprep.subr.bf16.mxu0 0
          %642 = vmatpush1.bf16.msra.mxu0 0
          %643 = vmatprep.subr.bf16.mxu0 0
          %644 = vmatpush1.bf16.msra.mxu0 0
          %645 = vmatprep.subr.bf16.mxu0 0
          %646 = vmatpush1.bf16.msra.mxu0 0
          %647 = vmatprep.subr.bf16.mxu0 0
          %648 = vmatpush1.bf16.msra.mxu0 0
          %649 = vmatprep.subr.bf16.mxu0 0
          %650 = vmatpush1.bf16.msra.mxu0 0
          %651 = vmatprep.mubr.bf16.mxu0 0
          %652 = vmatmul.mubr.bf16.gmra.mrb[0].mxu0 %v539
          %v653 = vpop.f32.mrb[0].mxu0
          %v654 = vadd.f32 0.0, %v653
          %v655 = vpop.f32.mrb[0].mxu0
          %v656 = vpop.f32.mrb[0].mxu0
          %v657 = vadd.f32 0.0, %v656
          %v658 = vpop.f32.mrb[0].mxu0
          %659 = vmatprep.mubr.bf16.mxu0 0
          %660 = vmatmul.mubr.bf16.gmra.mrb[0].mxu0 %v540
          %v661 = vpop.f32.mrb[0].mxu0
          %v662 = vadd.f32 0.0, %v661
          %v663 = vpop.f32.mrb[0].mxu0
          %v664 = vpop.f32.mrb[0].mxu0
          %v665 = vadd.f32 0.0, %v664
          %v666 = vpop.f32.mrb[0].mxu0
          %667 = vmatprep.mubr.bf16.mxu0 0
          %668 = vmatmul.mubr.bf16.gmra.mrb[0].mxu0 %v541
          %v669 = vpop.f32.mrb[0].mxu0
          %v670 = vadd.f32 0.0, %v669
          %v671 = vpop.f32.mrb[0].mxu0
          %v672 = vpop.f32.mrb[0].mxu0
          %v673 = vadd.f32 0.0, %v672
          %v674 = vpop.f32.mrb[0].mxu0
          %675 = vmatprep.mubr.bf16.mxu0 0
          %676 = vmatmul.mubr.bf16.gmra.mrb[0].mxu0 %v542
          %v677 = vpop.f32.mrb[0].mxu0
          %v678 = vadd.f32 0.0, %v677
          %v679 = vpop.f32.mrb[0].mxu0
          %v680 = vpop.f32.mrb[0].mxu0
          %v681 = vadd.f32 0.0, %v680
          %v682 = vpop.f32.mrb[0].mxu0
          %683 = vmatprep.mubr.bf16.mxu0 0
          %684 = vmatmul.mubr.bf16.gmra.mrb[0].mxu0 %v543
          %v685 = vpop.f32.mrb[0].mxu0
          %v686 = vadd.f32 0.0, %v685
          %v687 = vpop.f32.mrb[0].mxu0
          %v688 = vpop.f32.mrb[0].mxu0
          %v689 = vadd.f32 0.0, %v688
          %v690 = vpop.f32.mrb[0].mxu0
          %691 = vmatprep.mubr.bf16.mxu0 0
          %692 = vmatmul.mubr.bf16.gmra.mrb[0].mxu0 %v544
          %v693 = vpop.f32.mrb[0].mxu0
          %v694 = vadd.f32 0.0, %v693
          %v695 = vpop.f32.mrb[0].mxu0
          %v696 = vpop.f32.mrb[0].mxu0
          %v697 = vadd.f32 0.0, %v696
          %v698 = vpop.f32.mrb[0].mxu0
          %699 = vmatprep.mubr.bf16.mxu0 0
          %700 = vmatmul.mubr.bf16.gmra.mrb[0].mxu0 %v545
          %v701 = vpop.f32.mrb[0].mxu0
          %v702 = vadd.f32 0.0, %v701
          %v703 = vpop.f32.mrb[0].mxu0
          %v704 = vpop.f32.mrb[0].mxu0
          %v705 = vadd.f32 0.0, %v704
          %v706 = vpop.f32.mrb[0].mxu0
          %707 = vmatprep.mubr.bf16.mxu0 0
          %708 = vmatmul.mubr.bf16.gmra.mrb[0].mxu0 %v546
          %v709 = vpop.f32.mrb[0].mxu0
          %v710 = vadd.f32 0.0, %v709
          %v711 = vpop.f32.mrb[0].mxu0
          %v712 = vpop.f32.mrb[0].mxu0
          %v713 = vadd.f32 0.0, %v712
          %v714 = vpop.f32.mrb[0].mxu0
          %715 = vmatprep.mubr.bf16.mxu0 0
          %716 = vmatmul.mubr.bf16.gmra.mrb[0].mxu0 %v547
          %v717 = vpop.f32.mrb[0].mxu0
          %v718 = vadd.f32 0.0, %v717
          %v719 = vpop.f32.mrb[0].mxu0
          %v720 = vpop.f32.mrb[0].mxu0
          %v721 = vadd.f32 0.0, %v720
          %v722 = vpop.f32.mrb[0].mxu0
          %723 = vmatprep.mubr.bf16.mxu0 0
          %724 = vmatmul.mubr.bf16.gmra.mrb[0].mxu0 %v548
          %v725 = vpop.f32.mrb[0].mxu0
          %v726 = vadd.f32 0.0, %v725
          %v727 = vpop.f32.mrb[0].mxu0
          %v728 = vpop.f32.mrb[0].mxu0
          %v729 = vadd.f32 0.0, %v728
          %v730 = vpop.f32.mrb[0].mxu0
          %731 = vmatprep.mubr.bf16.mxu0 0
          %732 = vmatmul.mubr.bf16.gmra.mrb[0].mxu0 %v549
          %v733 = vpop.f32.mrb[0].mxu0
          %v734 = vadd.f32 0.0, %v733
          %v735 = vpop.f32.mrb[0].mxu0
          %v736 = vpop.f32.mrb[0].mxu0
          %v737 = vadd.f32 0.0, %v736
          %v738 = vpop.f32.mrb[0].mxu0
          %739 = vmatprep.mubr.bf16.mxu0 0
          %740 = vmatmul.mubr.bf16.gmra.mrb[0].mxu0 %v550
          %v741 = vpop.f32.mrb[0].mxu0
          %v742 = vadd.f32 0.0, %v741
          %v743 = vpop.f32.mrb[0].mxu0
          %v744 = vpop.f32.mrb[0].mxu0
          %v745 = vadd.f32 0.0, %v744
          %v746 = vpop.f32.mrb[0].mxu0
          %747 = vmatprep.mubr.bf16.mxu0 0
          %748 = vmatmul.mubr.bf16.gmra.mrb[0].mxu0 %v551
          %v749 = vpop.f32.mrb[0].mxu0
          %v750 = vadd.f32 0.0, %v749
          %v751 = vpop.f32.mrb[0].mxu0
          %v752 = vpop.f32.mrb[0].mxu0
          %v753 = vadd.f32 0.0, %v752
          %v754 = vpop.f32.mrb[0].mxu0
          %755 = vmatprep.mubr.bf16.mxu0 0
          %756 = vmatmul.mubr.bf16.gmra.mrb[0].mxu0 %v552
          %v757 = vpop.f32.mrb[0].mxu0
          %v758 = vadd.f32 0.0, %v757
          %v759 = vpop.f32.mrb[0].mxu0
          %v760 = vpop.f32.mrb[0].mxu0
          %v761 = vadd.f32 0.0, %v760
          %v762 = vpop.f32.mrb[0].mxu0
          %763 = vmatprep.mubr.bf16.mxu0 0
          %764 = vmatmul.mubr.bf16.gmra.mrb[0].mxu0 %v553
          %v765 = vpop.f32.mrb[0].mxu0
          %v766 = vadd.f32 0.0, %v765
          %v767 = vpop.f32.mrb[0].mxu0
          %v768 = vpop.f32.mrb[0].mxu0
          %v769 = vadd.f32 0.0, %v768
          %v770 = vpop.f32.mrb[0].mxu0
          %771 = vmatprep.mubr.bf16.mxu0 0
          %772 = vmatmul.mubr.bf16.gmra.mrb[0].mxu0 %v554
          %v773 = vpop.f32.mrb[0].mxu0
          %v774 = vadd.f32 0.0, %v773
          %v775 = vpop.f32.mrb[0].mxu0
          %v776 = vpop.f32.mrb[0].mxu0
          %v777 = vadd.f32 0.0, %v776
          %v778 = vpop.f32.mrb[0].mxu0
          %779 = vdwg.mxu0
          %v780 = vpack.c.bf16 %v657, %v654
          %v781 = vpack.c.bf16 %v665, %v662
          %v782 = vpack.c.bf16 %v673, %v670
          %v783 = vpack.c.bf16 %v681, %v678
          %v784 = vpack.c.bf16 %v689, %v686
          %v785 = vpack.c.bf16 %v697, %v694
          %v786 = vpack.c.bf16 %v705, %v702
          %v787 = vpack.c.bf16 %v713, %v710
          %v788 = vpack.c.bf16 %v721, %v718
          %v789 = vpack.c.bf16 %v729, %v726
          %v790 = vpack.c.bf16 %v737, %v734
          %v791 = vpack.c.bf16 %v745, %v742
          %v792 = vpack.c.bf16 %v753, %v750
          %v793 = vpack.c.bf16 %v761, %v758
          %v794 = vpack.c.bf16 %v769, %v766
          %v795 = vpack.c.bf16 %v777, %v774
          %796 = vst [vmem:[#allocation2] sm:$0xff] %v780
          %797 = vst [vmem:[#allocation2 + $0x8] sm:$0xff] %v781
          %798 = vst [vmem:[#allocation2 + $0x10] sm:$0xff] %v782
          %799 = vst [vmem:[#allocation2 + $0x18] sm:$0xff] %v783
          %800 = vst [vmem:[#allocation2 + $0x20] sm:$0xff] %v784
          %801 = vst [vmem:[#allocation2 + $0x28] sm:$0xff] %v785
          %802 = vst [vmem:[#allocation2 + $0x30] sm:$0xff] %v786
          %803 = vst [vmem:[#allocation2 + $0x38] sm:$0xff] %v787
          %804 = vst [vmem:[#allocation2 + $0x40] sm:$0xff] %v788
          %805 = vst [vmem:[#allocation2 + $0x48] sm:$0xff] %v789
          %806 = vst [vmem:[#allocation2 + $0x50] sm:$0xff] %v790
          %807 = vst [vmem:[#allocation2 + $0x58] sm:$0xff] %v791
          %808 = vst [vmem:[#allocation2 + $0x60] sm:$0xff] %v792
          %809 = vst [vmem:[#allocation2 + $0x68] sm:$0xff] %v793
          %810 = vst [vmem:[#allocation2 + $0x70] sm:$0xff] %v794
          %811 = vst [vmem:[#allocation2 + $0x78] sm:$0xff] %v795
          %812 = vst [vmem:[#allocation3] sm:$0xff] 0.0
          %813 = vst [vmem:[#allocation3 + $0x8] sm:$0xff] 0.0
          %814 = vst [vmem:[#allocation3 + $0x10] sm:$0xff] 0.0
          %815 = vst [vmem:[#allocation3 + $0x18] sm:$0xff] 0.0
          %816 = vst [vmem:[#allocation3 + $0x20] sm:$0xff] 0.0
          %817 = vst [vmem:[#allocation3 + $0x28] sm:$0xff] 0.0
          %818 = vst [vmem:[#allocation3 + $0x30] sm:$0xff] 0.0
          %819 = vst [vmem:[#allocation3 + $0x38] sm:$0xff] 0.0
          %820 = vst [vmem:[#allocation3 + $0x40] sm:$0xff] 0.0
          %821 = vst [vmem:[#allocation3 + $0x48] sm:$0xff] 0.0
          %822 = vst [vmem:[#allocation3 + $0x50] sm:$0xff] 0.0
          %823 = vst [vmem:[#allocation3 + $0x58] sm:$0xff] 0.0
          %824 = vst [vmem:[#allocation3 + $0x60] sm:$0xff] 0.0
          %825 = vst [vmem:[#allocation3 + $0x68] sm:$0xff] 0.0
          %826 = vst [vmem:[#allocation3 + $0x70] sm:$0xff] 0.0
          %827 = vst [vmem:[#allocation3 + $0x78] sm:$0xff] 0.0
          %828 = vst [vmem:[#allocation3 + $0x80] sm:$0xff] 0.0
          %829 = vst [vmem:[#allocation3 + $0x88] sm:$0xff] 0.0
          %830 = vst [vmem:[#allocation3 + $0x90] sm:$0xff] 0.0
          %831 = vst [vmem:[#allocation3 + $0x98] sm:$0xff] 0.0
          %832 = vst [vmem:[#allocation3 + $0xa0] sm:$0xff] 0.0
          %833 = vst [vmem:[#allocation3 + $0xa8] sm:$0xff] 0.0
          %834 = vst [vmem:[#allocation3 + $0xb0] sm:$0xff] 0.0
          %835 = vst [vmem:[#allocation3 + $0xb8] sm:$0xff] 0.0
          %836 = vst [vmem:[#allocation3 + $0xc0] sm:$0xff] 0.0
          %837 = vst [vmem:[#allocation3 + $0xc8] sm:$0xff] 0.0
          %838 = vst [vmem:[#allocation3 + $0xd0] sm:$0xff] 0.0
          %839 = vst [vmem:[#allocation3 + $0xd8] sm:$0xff] 0.0
          %840 = vst [vmem:[#allocation3 + $0xe0] sm:$0xff] 0.0
          %841 = vst [vmem:[#allocation3 + $0xe8] sm:$0xff] 0.0
          %842 = vst [vmem:[#allocation3 + $0xf0] sm:$0xff] 0.0
          %843 = vst [vmem:[#allocation3 + $0xf8] sm:$0xff] 0.0
        $region89: #{feed_forward.1} parent=80 // pred_fallthru
          _
        %v844 = vld [vmem:[#allocation2] sm:$0xff]
        %v845 = vld [vmem:[#allocation2 + $0x8] sm:$0xff]
        %v846 = vld [vmem:[#allocation2 + $0x10] sm:$0xff]
        %v847 = vld [vmem:[#allocation2 + $0x18] sm:$0xff]
        %v848 = vld [vmem:[#allocation2 + $0x20] sm:$0xff]
        %v849 = vld [vmem:[#allocation2 + $0x28] sm:$0xff]
        %v850 = vld [vmem:[#allocation2 + $0x30] sm:$0xff]
        %v851 = vld [vmem:[#allocation2 + $0x38] sm:$0xff]
        %v852 = vld [vmem:[#allocation2 + $0x40] sm:$0xff]
        %v853 = vld [vmem:[#allocation2 + $0x48] sm:$0xff]
        %v854 = vld [vmem:[#allocation2 + $0x50] sm:$0xff]
        %v855 = vld [vmem:[#allocation2 + $0x58] sm:$0xff]
        %v856 = vld [vmem:[#allocation2 + $0x60] sm:$0xff]
        %v857 = vld [vmem:[#allocation2 + $0x68] sm:$0xff]
        %v858 = vld [vmem:[#allocation2 + $0x70] sm:$0xff]
        %v859 = vld [vmem:[#allocation2 + $0x78] sm:$0xff]
        %v860 = vld [vmem:[%s366] sm:$0xf]
        %v861 = vld [vmem:[%s366 + $0x4] sm:$0xf]
        %v862 = vld [vmem:[%s366 + $0x8] sm:$0xf]
        %v863 = vld [vmem:[%s366 + $0xc] sm:$0xf]
        %v864 = vld [vmem:[%s366 + $0x10] sm:$0xf]
        %v865 = vld [vmem:[%s366 + $0x14] sm:$0xf]
        %v866 = vld [vmem:[%s366 + $0x18] sm:$0xf]
        %v867 = vld [vmem:[%s366 + $0x1c] sm:$0xf]
        %v868 = vld [vmem:[%s366 + $0x20] sm:$0xf]
        %v869 = vld [vmem:[%s366 + $0x24] sm:$0xf]
        %v870 = vld [vmem:[%s366 + $0x28] sm:$0xf]
        %v871 = vld [vmem:[%s366 + $0x2c] sm:$0xf]
        %v872 = vld [vmem:[%s366 + $0x30] sm:$0xf]
        %v873 = vld [vmem:[%s366 + $0x34] sm:$0xf]
        %v874 = vld [vmem:[%s366 + $0x38] sm:$0xf]
        %v875 = vld [vmem:[%s366 + $0x3c] sm:$0xf]
        %v876 = vld [vmem:[%s414] sm:$0x1]
        %v878 = vlaneseq
        %v879 = vshrl.u32 %v878, 7
        %v880 = vsub.s32 0, %v879
        %v881 = vrot.slane %v876, %v880
        %v899 = vunpack.c.l.b16 %v860
        %v900 = vunpack.c.l.b16 %v861
        %v901 = vunpack.c.l.b16 %v862
        %v902 = vunpack.c.l.b16 %v863
        %v903 = vunpack.c.l.b16 %v864
        %v904 = vunpack.c.l.b16 %v865
        %v905 = vunpack.c.l.b16 %v866
        %v906 = vunpack.c.l.b16 %v867
        %v907 = vunpack.c.l.b16 %v868
        %v908 = vunpack.c.l.b16 %v869
        %v909 = vunpack.c.l.b16 %v870
        %v910 = vunpack.c.l.b16 %v871
        %v911 = vunpack.c.l.b16 %v872
        %v912 = vunpack.c.l.b16 %v873
        %v913 = vunpack.c.l.b16 %v874
        %v914 = vunpack.c.l.b16 %v875
        %v915 = vpack.c.b16 %v900, %v899
        %v916 = vpack.c.b16 %v902, %v901
        %v917 = vpack.c.b16 %v904, %v903
        %v918 = vpack.c.b16 %v906, %v905
        %v919 = vpack.c.b16 %v908, %v907
        %v920 = vpack.c.b16 %v910, %v909
        %v921 = vpack.c.b16 %v912, %v911
        %v922 = vpack.c.b16 %v914, %v913
        %931 = vmatprep.subr.bf16.mxu0 0
        %932 = vmatpush1.bf16.msra.mxu0 %v915
        %933 = vmatprep.subr.bf16.mxu0 0
        %934 = vmatpush1.bf16.msra.mxu0 %v916
        %935 = vmatprep.subr.bf16.mxu0 0
        %936 = vmatpush1.bf16.msra.mxu0 %v917
        %937 = vmatprep.subr.bf16.mxu0 0
        %938 = vmatpush1.bf16.msra.mxu0 %v918
        %939 = vmatprep.subr.bf16.mxu0 0
        %940 = vmatpush1.bf16.msra.mxu0 %v919
        %941 = vmatprep.subr.bf16.mxu0 0
        %942 = vmatpush1.bf16.msra.mxu0 %v920
        %943 = vmatprep.subr.bf16.mxu0 0
        %944 = vmatpush1.bf16.msra.mxu0 %v921
        %945 = vmatprep.subr.bf16.mxu0 0
        %946 = vmatpush1.bf16.msra.mxu0 %v922
        %947 = vmatprep.subr.bf16.mxu0 0
        %948 = vmatpush1.bf16.msra.mxu0 0
        %949 = vmatprep.subr.bf16.mxu0 0
        %950 = vmatpush1.bf16.msra.mxu0 0
        %951 = vmatprep.subr.bf16.mxu0 0
        %952 = vmatpush1.bf16.msra.mxu0 0
        %953 = vmatprep.subr.bf16.mxu0 0
        %954 = vmatpush1.bf16.msra.mxu0 0
        %955 = vmatprep.subr.bf16.mxu0 0
        %956 = vmatpush1.bf16.msra.mxu0 0
        %957 = vmatprep.subr.bf16.mxu0 0
        %958 = vmatpush1.bf16.msra.mxu0 0
        %959 = vmatprep.subr.bf16.mxu0 0
        %960 = vmatpush1.bf16.msra.mxu0 0
        %961 = vmatprep.subr.bf16.mxu0 0
        %962 = vmatpush1.bf16.msra.mxu0 0
        %963 = vmatprep.mubr.bf16.mxu0 0
        %964 = vmatmul.mubr.bf16.gmra.mrb[0].mxu0 %v844
        %v965 = vpop.f32.mrb[0].mxu0
        %v966 = vadd.f32 %v881, %v965
        %v967 = vpop.f32.mrb[0].mxu0
        %v968 = vpop.f32.mrb[0].mxu0
        %v969 = vadd.f32 %v881, %v968
        %v970 = vpop.f32.mrb[0].mxu0
        %971 = vmatprep.mubr.bf16.mxu0 0
        %972 = vmatmul.mubr.bf16.gmra.mrb[0].mxu0 %v845
        %v973 = vpop.f32.mrb[0].mxu0
        %v974 = vadd.f32 %v881, %v973
        %v975 = vpop.f32.mrb[0].mxu0
        %v976 = vpop.f32.mrb[0].mxu0
        %v977 = vadd.f32 %v881, %v976
        %v978 = vpop.f32.mrb[0].mxu0
        %979 = vmatprep.mubr.bf16.mxu0 0
        %980 = vmatmul.mubr.bf16.gmra.mrb[0].mxu0 %v846
        %v981 = vpop.f32.mrb[0].mxu0
        %v982 = vadd.f32 %v881, %v981
        %v983 = vpop.f32.mrb[0].mxu0
        %v984 = vpop.f32.mrb[0].mxu0
        %v985 = vadd.f32 %v881, %v984
        %v986 = vpop.f32.mrb[0].mxu0
        %987 = vmatprep.mubr.bf16.mxu0 0
        %988 = vmatmul.mubr.bf16.gmra.mrb[0].mxu0 %v847
        %v989 = vpop.f32.mrb[0].mxu0
        %v990 = vadd.f32 %v881, %v989
        %v991 = vpop.f32.mrb[0].mxu0
        %v992 = vpop.f32.mrb[0].mxu0
        %v993 = vadd.f32 %v881, %v992
        %v994 = vpop.f32.mrb[0].mxu0
        %995 = vmatprep.mubr.bf16.mxu0 0
        %996 = vmatmul.mubr.bf16.gmra.mrb[0].mxu0 %v848
        %v997 = vpop.f32.mrb[0].mxu0
        %v998 = vadd.f32 %v881, %v997
        %v999 = vpop.f32.mrb[0].mxu0
        %v1000 = vpop.f32.mrb[0].mxu0
        %v1001 = vadd.f32 %v881, %v1000
        %v1002 = vpop.f32.mrb[0].mxu0
        %1003 = vmatprep.mubr.bf16.mxu0 0
        %1004 = vmatmul.mubr.bf16.gmra.mrb[0].mxu0 %v849
        %v1005 = vpop.f32.mrb[0].mxu0
        %v1006 = vadd.f32 %v881, %v1005
        %v1007 = vpop.f32.mrb[0].mxu0
        %v1008 = vpop.f32.mrb[0].mxu0
        %v1009 = vadd.f32 %v881, %v1008
        %v1010 = vpop.f32.mrb[0].mxu0
        %1011 = vmatprep.mubr.bf16.mxu0 0
        %1012 = vmatmul.mubr.bf16.gmra.mrb[0].mxu0 %v850
        %v1013 = vpop.f32.mrb[0].mxu0
        %v1014 = vadd.f32 %v881, %v1013
        %v1015 = vpop.f32.mrb[0].mxu0
        %v1016 = vpop.f32.mrb[0].mxu0
        %v1017 = vadd.f32 %v881, %v1016
        %v1018 = vpop.f32.mrb[0].mxu0
        %1019 = vmatprep.mubr.bf16.mxu0 0
        %1020 = vmatmul.mubr.bf16.gmra.mrb[0].mxu0 %v851
        %v1021 = vpop.f32.mrb[0].mxu0
        %v1022 = vadd.f32 %v881, %v1021
        %v1023 = vpop.f32.mrb[0].mxu0
        %v1024 = vpop.f32.mrb[0].mxu0
        %v1025 = vadd.f32 %v881, %v1024
        %v1026 = vpop.f32.mrb[0].mxu0
        %1027 = vmatprep.mubr.bf16.mxu0 0
        %1028 = vmatmul.mubr.bf16.gmra.mrb[0].mxu0 %v852
        %v1029 = vpop.f32.mrb[0].mxu0
        %v1030 = vadd.f32 %v881, %v1029
        %v1031 = vpop.f32.mrb[0].mxu0
        %v1032 = vpop.f32.mrb[0].mxu0
        %v1033 = vadd.f32 %v881, %v1032
        %v1034 = vpop.f32.mrb[0].mxu0
        %1035 = vmatprep.mubr.bf16.mxu0 0
        %1036 = vmatmul.mubr.bf16.gmra.mrb[0].mxu0 %v853
        %v1037 = vpop.f32.mrb[0].mxu0
        %v1038 = vadd.f32 %v881, %v1037
        %v1039 = vpop.f32.mrb[0].mxu0
        %v1040 = vpop.f32.mrb[0].mxu0
        %v1041 = vadd.f32 %v881, %v1040
        %v1042 = vpop.f32.mrb[0].mxu0
        %1043 = vmatprep.mubr.bf16.mxu0 0
        %1044 = vmatmul.mubr.bf16.gmra.mrb[0].mxu0 %v854
        %v1045 = vpop.f32.mrb[0].mxu0
        %v1046 = vadd.f32 %v881, %v1045
        %v1047 = vpop.f32.mrb[0].mxu0
        %v1048 = vpop.f32.mrb[0].mxu0
        %v1049 = vadd.f32 %v881, %v1048
        %v1050 = vpop.f32.mrb[0].mxu0
        %1051 = vmatprep.mubr.bf16.mxu0 0
        %1052 = vmatmul.mubr.bf16.gmra.mrb[0].mxu0 %v855
        %v1053 = vpop.f32.mrb[0].mxu0
        %v1054 = vadd.f32 %v881, %v1053
        %v1055 = vpop.f32.mrb[0].mxu0
        %v1056 = vpop.f32.mrb[0].mxu0
        %v1057 = vadd.f32 %v881, %v1056
        %v1058 = vpop.f32.mrb[0].mxu0
        %1059 = vmatprep.mubr.bf16.mxu0 0
        %1060 = vmatmul.mubr.bf16.gmra.mrb[0].mxu0 %v856
        %v1061 = vpop.f32.mrb[0].mxu0
        %v1062 = vadd.f32 %v881, %v1061
        %v1063 = vpop.f32.mrb[0].mxu0
        %v1064 = vpop.f32.mrb[0].mxu0
        %v1065 = vadd.f32 %v881, %v1064
        %v1066 = vpop.f32.mrb[0].mxu0
        %1067 = vmatprep.mubr.bf16.mxu0 0
        %1068 = vmatmul.mubr.bf16.gmra.mrb[0].mxu0 %v857
        %v1069 = vpop.f32.mrb[0].mxu0
        %v1070 = vadd.f32 %v881, %v1069
        %v1071 = vpop.f32.mrb[0].mxu0
        %v1072 = vpop.f32.mrb[0].mxu0
        %v1073 = vadd.f32 %v881, %v1072
        %v1074 = vpop.f32.mrb[0].mxu0
        %1075 = vmatprep.mubr.bf16.mxu0 0
        %1076 = vmatmul.mubr.bf16.gmra.mrb[0].mxu0 %v858
        %v1077 = vpop.f32.mrb[0].mxu0
        %v1078 = vadd.f32 %v881, %v1077
        %v1079 = vpop.f32.mrb[0].mxu0
        %v1080 = vpop.f32.mrb[0].mxu0
        %v1081 = vadd.f32 %v881, %v1080
        %v1082 = vpop.f32.mrb[0].mxu0
        %1083 = vmatprep.mubr.bf16.mxu0 0
        %1084 = vmatmul.mubr.bf16.gmra.mrb[0].mxu0 %v859
        %v1085 = vpop.f32.mrb[0].mxu0
        %v1086 = vadd.f32 %v881, %v1085
        %v1087 = vpop.f32.mrb[0].mxu0
        %v1088 = vpop.f32.mrb[0].mxu0
        %v1089 = vadd.f32 %v881, %v1088
        %v1090 = vpop.f32.mrb[0].mxu0
        %1091 = vdwg.mxu0
        %v1092 = vmul.f32 %v966, 0.5
        %v1093 = vmul.f32 %v969, 0.5
        %v1094 = vmul.f32 %v974, 0.5
        %v1095 = vmul.f32 %v977, 0.5
        %v1096 = vmul.f32 %v982, 0.5
        %v1097 = vmul.f32 %v985, 0.5
        %v1098 = vmul.f32 %v990, 0.5
        %v1099 = vmul.f32 %v993, 0.5
        %v1100 = vmul.f32 %v998, 0.5
        %v1101 = vmul.f32 %v1001, 0.5
        %v1102 = vmul.f32 %v1006, 0.5
        %v1103 = vmul.f32 %v1009, 0.5
        %v1104 = vmul.f32 %v1014, 0.5
        %v1105 = vmul.f32 %v1017, 0.5
        %v1106 = vmul.f32 %v1022, 0.5
        %v1107 = vmul.f32 %v1025, 0.5
        %v1108 = vmul.f32 %v1030, 0.5
        %v1109 = vmul.f32 %v1033, 0.5
        %v1110 = vmul.f32 %v1038, 0.5
        %v1111 = vmul.f32 %v1041, 0.5
        %v1112 = vmul.f32 %v1046, 0.5
        %v1113 = vmul.f32 %v1049, 0.5
        %v1114 = vmul.f32 %v1054, 0.5
        %v1115 = vmul.f32 %v1057, 0.5
        %v1116 = vmul.f32 %v1062, 0.5
        %v1117 = vmul.f32 %v1065, 0.5
        %v1118 = vmul.f32 %v1070, 0.5
        %v1119 = vmul.f32 %v1073, 0.5
        %v1120 = vmul.f32 %v1078, 0.5
        %v1121 = vmul.f32 %v1081, 0.5
        %v1122 = vmul.f32 %v1086, 0.5
        %v1123 = vmul.f32 %v1089, 0.5
        %v1124 = vmul.f32 %v966, 0.70710677
        %v1125 = vmul.f32 %v969, 0.70710677
        %v1126 = vmul.f32 %v974, 0.70710677
        %v1127 = vmul.f32 %v977, 0.70710677
        %v1128 = vmul.f32 %v982, 0.70710677
        %v1129 = vmul.f32 %v985, 0.70710677
        %v1130 = vmul.f32 %v990, 0.70710677
        %v1131 = vmul.f32 %v993, 0.70710677
        %v1132 = vmul.f32 %v998, 0.70710677
        %v1133 = vmul.f32 %v1001, 0.70710677
        %v1134 = vmul.f32 %v1006, 0.70710677
        %v1135 = vmul.f32 %v1009, 0.70710677
        %v1136 = vmul.f32 %v1014, 0.70710677
        %v1137 = vmul.f32 %v1017, 0.70710677
        %v1138 = vmul.f32 %v1022, 0.70710677
        %v1139 = vmul.f32 %v1025, 0.70710677
        %v1140 = vmul.f32 %v1030, 0.70710677
        %v1141 = vmul.f32 %v1033, 0.70710677
        %v1142 = vmul.f32 %v1038, 0.70710677
        %v1143 = vmul.f32 %v1041, 0.70710677
        %v1144 = vmul.f32 %v1046, 0.70710677
        %v1145 = vmul.f32 %v1049, 0.70710677
        %v1146 = vmul.f32 %v1054, 0.70710677
        %v1147 = vmul.f32 %v1057, 0.70710677
        %v1148 = vmul.f32 %v1062, 0.70710677
        %v1149 = vmul.f32 %v1065, 0.70710677
        %v1150 = vmul.f32 %v1070, 0.70710677
        %v1151 = vmul.f32 %v1073, 0.70710677
        %v1152 = vmul.f32 %v1078, 0.70710677
        %v1153 = vmul.f32 %v1081, 0.70710677
        %v1154 = vmul.f32 %v1086, 0.70710677
        %v1155 = vmul.f32 %v1089, 0.70710677
        %v1156 = verf.f32.pop %v1124
        %v1157 = verf.f32.pop %v1125
        %v1158 = verf.f32.pop %v1126
        %v1159 = verf.f32.pop %v1127
        %v1160 = verf.f32.pop %v1128
        %v1161 = verf.f32.pop %v1129
        %v1162 = verf.f32.pop %v1130
        %v1163 = verf.f32.pop %v1131
        %v1164 = verf.f32.pop %v1132
        %v1165 = verf.f32.pop %v1133
        %v1166 = verf.f32.pop %v1134
        %v1167 = verf.f32.pop %v1135
        %v1168 = verf.f32.pop %v1136
        %v1169 = verf.f32.pop %v1137
        %v1170 = verf.f32.pop %v1138
        %v1171 = verf.f32.pop %v1139
        %v1172 = verf.f32.pop %v1140
        %v1173 = verf.f32.pop %v1141
        %v1174 = verf.f32.pop %v1142
        %v1175 = verf.f32.pop %v1143
        %v1176 = verf.f32.pop %v1144
        %v1177 = verf.f32.pop %v1145
        %v1178 = verf.f32.pop %v1146
        %v1179 = verf.f32.pop %v1147
        %v1180 = verf.f32.pop %v1148
        %v1181 = verf.f32.pop %v1149
        %v1182 = verf.f32.pop %v1150
        %v1183 = verf.f32.pop %v1151
        %v1184 = verf.f32.pop %v1152
        %v1185 = verf.f32.pop %v1153
        %v1186 = verf.f32.pop %v1154
        %v1187 = verf.f32.pop %v1155
        %v1188 = vadd.f32 %v1156, 1.0
        %v1189 = vadd.f32 %v1157, 1.0
        %v1190 = vadd.f32 %v1158, 1.0
        %v1191 = vadd.f32 %v1159, 1.0
        %v1192 = vadd.f32 %v1160, 1.0
        %v1193 = vadd.f32 %v1161, 1.0
        %v1194 = vadd.f32 %v1162, 1.0
        %v1195 = vadd.f32 %v1163, 1.0
        %v1196 = vadd.f32 %v1164, 1.0
        %v1197 = vadd.f32 %v1165, 1.0
        %v1198 = vadd.f32 %v1166, 1.0
        %v1199 = vadd.f32 %v1167, 1.0
        %v1200 = vadd.f32 %v1168, 1.0
        %v1201 = vadd.f32 %v1169, 1.0
        %v1202 = vadd.f32 %v1170, 1.0
        %v1203 = vadd.f32 %v1171, 1.0
        %v1204 = vadd.f32 %v1172, 1.0
        %v1205 = vadd.f32 %v1173, 1.0
        %v1206 = vadd.f32 %v1174, 1.0
        %v1207 = vadd.f32 %v1175, 1.0
        %v1208 = vadd.f32 %v1176, 1.0
        %v1209 = vadd.f32 %v1177, 1.0
        %v1210 = vadd.f32 %v1178, 1.0
        %v1211 = vadd.f32 %v1179, 1.0
        %v1212 = vadd.f32 %v1180, 1.0
        %v1213 = vadd.f32 %v1181, 1.0
        %v1214 = vadd.f32 %v1182, 1.0
        %v1215 = vadd.f32 %v1183, 1.0
        %v1216 = vadd.f32 %v1184, 1.0
        %v1217 = vadd.f32 %v1185, 1.0
        %v1218 = vadd.f32 %v1186, 1.0
        %v1219 = vadd.f32 %v1187, 1.0
        %v1220 = vmul.f32 %v1092, %v1188
        %v1221 = vmul.f32 %v1093, %v1189
        %v1222 = vmul.f32 %v1094, %v1190
        %v1223 = vmul.f32 %v1095, %v1191
        %v1224 = vmul.f32 %v1096, %v1192
        %v1225 = vmul.f32 %v1097, %v1193
        %v1226 = vmul.f32 %v1098, %v1194
        %v1227 = vmul.f32 %v1099, %v1195
        %v1228 = vmul.f32 %v1100, %v1196
        %v1229 = vmul.f32 %v1101, %v1197
        %v1230 = vmul.f32 %v1102, %v1198
        %v1231 = vmul.f32 %v1103, %v1199
        %v1232 = vmul.f32 %v1104, %v1200
        %v1233 = vmul.f32 %v1105, %v1201
        %v1234 = vmul.f32 %v1106, %v1202
        %v1235 = vmul.f32 %v1107, %v1203
        %v1236 = vmul.f32 %v1108, %v1204
        %v1237 = vmul.f32 %v1109, %v1205
        %v1238 = vmul.f32 %v1110, %v1206
        %v1239 = vmul.f32 %v1111, %v1207
        %v1240 = vmul.f32 %v1112, %v1208
        %v1241 = vmul.f32 %v1113, %v1209
        %v1242 = vmul.f32 %v1114, %v1210
        %v1243 = vmul.f32 %v1115, %v1211
        %v1244 = vmul.f32 %v1116, %v1212
        %v1245 = vmul.f32 %v1117, %v1213
        %v1246 = vmul.f32 %v1118, %v1214
        %v1247 = vmul.f32 %v1119, %v1215
        %v1248 = vmul.f32 %v1120, %v1216
        %v1249 = vmul.f32 %v1121, %v1217
        %v1250 = vmul.f32 %v1122, %v1218
        %v1251 = vmul.f32 %v1123, %v1219
        %v1252 = vld [vmem:[#allocation3] sm:$0xff]
        %v1253 = vld [vmem:[#allocation3 + $0x8] sm:$0xff]
        %v1254 = vld [vmem:[#allocation3 + $0x10] sm:$0xff]
        %v1255 = vld [vmem:[#allocation3 + $0x18] sm:$0xff]
        %v1256 = vld [vmem:[#allocation3 + $0x20] sm:$0xff]
        %v1257 = vld [vmem:[#allocation3 + $0x28] sm:$0xff]
        %v1258 = vld [vmem:[#allocation3 + $0x30] sm:$0xff]
        %v1259 = vld [vmem:[#allocation3 + $0x38] sm:$0xff]
        %v1260 = vld [vmem:[#allocation3 + $0x40] sm:$0xff]
        %v1261 = vld [vmem:[#allocation3 + $0x48] sm:$0xff]
        %v1262 = vld [vmem:[#allocation3 + $0x50] sm:$0xff]
        %v1263 = vld [vmem:[#allocation3 + $0x58] sm:$0xff]
        %v1264 = vld [vmem:[#allocation3 + $0x60] sm:$0xff]
        %v1265 = vld [vmem:[#allocation3 + $0x68] sm:$0xff]
        %v1266 = vld [vmem:[#allocation3 + $0x70] sm:$0xff]
        %v1267 = vld [vmem:[#allocation3 + $0x78] sm:$0xff]
        %v1268 = vld [vmem:[#allocation3 + $0x80] sm:$0xff]
        %v1269 = vld [vmem:[#allocation3 + $0x88] sm:$0xff]
        %v1270 = vld [vmem:[#allocation3 + $0x90] sm:$0xff]
        %v1271 = vld [vmem:[#allocation3 + $0x98] sm:$0xff]
        %v1272 = vld [vmem:[#allocation3 + $0xa0] sm:$0xff]
        %v1273 = vld [vmem:[#allocation3 + $0xa8] sm:$0xff]
        %v1274 = vld [vmem:[#allocation3 + $0xb0] sm:$0xff]
        %v1275 = vld [vmem:[#allocation3 + $0xb8] sm:$0xff]
        %v1276 = vld [vmem:[#allocation3 + $0xc0] sm:$0xff]
        %v1277 = vld [vmem:[#allocation3 + $0xc8] sm:$0xff]
        %v1278 = vld [vmem:[#allocation3 + $0xd0] sm:$0xff]
        %v1279 = vld [vmem:[#allocation3 + $0xd8] sm:$0xff]
        %v1280 = vld [vmem:[#allocation3 + $0xe0] sm:$0xff]
        %v1281 = vld [vmem:[#allocation3 + $0xe8] sm:$0xff]
        %v1282 = vld [vmem:[#allocation3 + $0xf0] sm:$0xff]
        %v1283 = vld [vmem:[#allocation3 + $0xf8] sm:$0xff]
        %v1284 = vpack.c.bf16 %v1221, %v1220
        %v1285 = vpack.c.bf16 %v1223, %v1222
        %v1286 = vpack.c.bf16 %v1225, %v1224
        %v1287 = vpack.c.bf16 %v1227, %v1226
        %v1288 = vpack.c.bf16 %v1229, %v1228
        %v1289 = vpack.c.bf16 %v1231, %v1230
        %v1290 = vpack.c.bf16 %v1233, %v1232
        %v1291 = vpack.c.bf16 %v1235, %v1234
        %v1292 = vpack.c.bf16 %v1237, %v1236
        %v1293 = vpack.c.bf16 %v1239, %v1238
        %v1294 = vpack.c.bf16 %v1241, %v1240
        %v1295 = vpack.c.bf16 %v1243, %v1242
        %v1296 = vpack.c.bf16 %v1245, %v1244
        %v1297 = vpack.c.bf16 %v1247, %v1246
        %v1298 = vpack.c.bf16 %v1249, %v1248
        %v1299 = vpack.c.bf16 %v1251, %v1250
        %v1300 = vld [vmem:[%s419] sm:$0xf]
        %v1301 = vld [vmem:[%s419 + $0x4] sm:$0xf]
        %v1302 = vld [vmem:[%s419 + $0x8] sm:$0xf]
        %v1303 = vld [vmem:[%s419 + $0xc] sm:$0xf]
        %v1304 = vld [vmem:[%s419 + $0x10] sm:$0xf]
        %v1305 = vld [vmem:[%s419 + $0x14] sm:$0xf]
        %v1306 = vld [vmem:[%s419 + $0x18] sm:$0xf]
        %v1307 = vld [vmem:[%s419 + $0x1c] sm:$0xf]
        %v1308 = vld [vmem:[%s419 + $0x20] sm:$0xf]
        %v1309 = vld [vmem:[%s419 + $0x24] sm:$0xf]
        %v1310 = vld [vmem:[%s419 + $0x28] sm:$0xf]
        %v1311 = vld [vmem:[%s419 + $0x2c] sm:$0xf]
        %v1312 = vld [vmem:[%s419 + $0x30] sm:$0xf]
        %v1313 = vld [vmem:[%s419 + $0x34] sm:$0xf]
        %v1314 = vld [vmem:[%s419 + $0x38] sm:$0xf]
        %v1315 = vld [vmem:[%s419 + $0x3c] sm:$0xf]
        %v1332 = vunpack.c.l.b16 %v1300
        %v1333 = vunpack.c.l.b16 %v1301
        %v1334 = vunpack.c.l.b16 %v1302
        %v1335 = vunpack.c.l.b16 %v1303
        %v1336 = vunpack.c.l.b16 %v1304
        %v1337 = vunpack.c.l.b16 %v1305
        %v1338 = vunpack.c.l.b16 %v1306
        %v1339 = vunpack.c.l.b16 %v1307
        %v1340 = vunpack.c.l.b16 %v1308
        %v1341 = vunpack.c.l.b16 %v1309
        %v1342 = vunpack.c.l.b16 %v1310
        %v1343 = vunpack.c.l.b16 %v1311
        %v1344 = vunpack.c.l.b16 %v1312
        %v1345 = vunpack.c.l.b16 %v1313
        %v1346 = vunpack.c.l.b16 %v1314
        %v1347 = vunpack.c.l.b16 %v1315
        %v1348 = vpack.c.b16 %v1333, %v1332
        %v1349 = vpack.c.b16 %v1335, %v1334
        %v1350 = vpack.c.b16 %v1337, %v1336
        %v1351 = vpack.c.b16 %v1339, %v1338
        %v1352 = vpack.c.b16 %v1341, %v1340
        %v1353 = vpack.c.b16 %v1343, %v1342
        %v1354 = vpack.c.b16 %v1345, %v1344
        %v1355 = vpack.c.b16 %v1347, %v1346
        %1364 = vmatprep.subr.bf16.mxu0 0
        %1365 = vmatpush1.bf16.msra.mxu0 %v1348
        %1366 = vmatprep.subr.bf16.mxu0 0
        %1367 = vmatpush1.bf16.msra.mxu0 %v1349
        %1368 = vmatprep.subr.bf16.mxu0 0
        %1369 = vmatpush1.bf16.msra.mxu0 %v1350
        %1370 = vmatprep.subr.bf16.mxu0 0
        %1371 = vmatpush1.bf16.msra.mxu0 %v1351
        %1372 = vmatprep.subr.bf16.mxu0 0
        %1373 = vmatpush1.bf16.msra.mxu0 %v1352
        %1374 = vmatprep.subr.bf16.mxu0 0
        %1375 = vmatpush1.bf16.msra.mxu0 %v1353
        %1376 = vmatprep.subr.bf16.mxu0 0
        %1377 = vmatpush1.bf16.msra.mxu0 %v1354
        %1378 = vmatprep.subr.bf16.mxu0 0
        %1379 = vmatpush1.bf16.msra.mxu0 %v1355
        %1380 = vmatprep.subr.bf16.mxu0 0
        %1381 = vmatpush1.bf16.msra.mxu0 0
        %1382 = vmatprep.subr.bf16.mxu0 0
        %1383 = vmatpush1.bf16.msra.mxu0 0
        %1384 = vmatprep.subr.bf16.mxu0 0
        %1385 = vmatpush1.bf16.msra.mxu0 0
        %1386 = vmatprep.subr.bf16.mxu0 0
        %1387 = vmatpush1.bf16.msra.mxu0 0
        %1388 = vmatprep.subr.bf16.mxu0 0
        %1389 = vmatpush1.bf16.msra.mxu0 0
        %1390 = vmatprep.subr.bf16.mxu0 0
        %1391 = vmatpush1.bf16.msra.mxu0 0
        %1392 = vmatprep.subr.bf16.mxu0 0
        %1393 = vmatpush1.bf16.msra.mxu0 0
        %1394 = vmatprep.subr.bf16.mxu0 0
        %1395 = vmatpush1.bf16.msra.mxu0 0
        %1396 = vmatprep.mubr.bf16.mxu0 0
        %1397 = vmatmul.mubr.bf16.gmra.mrb[0].mxu0 %v1284
        %v1398 = vpop.f32.mrb[0].mxu0
        %v1399 = vadd.f32 0.0, %v1398
        %v1400 = vpop.f32.mrb[0].mxu0
        %v1401 = vpop.f32.mrb[0].mxu0
        %v1402 = vadd.f32 0.0, %v1401
        %v1403 = vpop.f32.mrb[0].mxu0
        %1404 = vmatprep.mubr.bf16.mxu0 0
        %1405 = vmatmul.mubr.bf16.gmra.mrb[0].mxu0 %v1285
        %v1406 = vpop.f32.mrb[0].mxu0
        %v1407 = vadd.f32 0.0, %v1406
        %v1408 = vpop.f32.mrb[0].mxu0
        %v1409 = vpop.f32.mrb[0].mxu0
        %v1410 = vadd.f32 0.0, %v1409
        %v1411 = vpop.f32.mrb[0].mxu0
        %1412 = vmatprep.mubr.bf16.mxu0 0
        %1413 = vmatmul.mubr.bf16.gmra.mrb[0].mxu0 %v1286
        %v1414 = vpop.f32.mrb[0].mxu0
        %v1415 = vadd.f32 0.0, %v1414
        %v1416 = vpop.f32.mrb[0].mxu0
        %v1417 = vpop.f32.mrb[0].mxu0
        %v1418 = vadd.f32 0.0, %v1417
        %v1419 = vpop.f32.mrb[0].mxu0
        %1420 = vmatprep.mubr.bf16.mxu0 0
        %1421 = vmatmul.mubr.bf16.gmra.mrb[0].mxu0 %v1287
        %v1422 = vpop.f32.mrb[0].mxu0
        %v1423 = vadd.f32 0.0, %v1422
        %v1424 = vpop.f32.mrb[0].mxu0
        %v1425 = vpop.f32.mrb[0].mxu0
        %v1426 = vadd.f32 0.0, %v1425
        %v1427 = vpop.f32.mrb[0].mxu0
        %1428 = vmatprep.mubr.bf16.mxu0 0
        %1429 = vmatmul.mubr.bf16.gmra.mrb[0].mxu0 %v1288
        %v1430 = vpop.f32.mrb[0].mxu0
        %v1431 = vadd.f32 0.0, %v1430
        %v1432 = vpop.f32.mrb[0].mxu0
        %v1433 = vpop.f32.mrb[0].mxu0
        %v1434 = vadd.f32 0.0, %v1433
        %v1435 = vpop.f32.mrb[0].mxu0
        %1436 = vmatprep.mubr.bf16.mxu0 0
        %1437 = vmatmul.mubr.bf16.gmra.mrb[0].mxu0 %v1289
        %v1438 = vpop.f32.mrb[0].mxu0
        %v1439 = vadd.f32 0.0, %v1438
        %v1440 = vpop.f32.mrb[0].mxu0
        %v1441 = vpop.f32.mrb[0].mxu0
        %v1442 = vadd.f32 0.0, %v1441
        %v1443 = vpop.f32.mrb[0].mxu0
        %1444 = vmatprep.mubr.bf16.mxu0 0
        %1445 = vmatmul.mubr.bf16.gmra.mrb[0].mxu0 %v1290
        %v1446 = vpop.f32.mrb[0].mxu0
        %v1447 = vadd.f32 0.0, %v1446
        %v1448 = vpop.f32.mrb[0].mxu0
        %v1449 = vpop.f32.mrb[0].mxu0
        %v1450 = vadd.f32 0.0, %v1449
        %v1451 = vpop.f32.mrb[0].mxu0
        %1452 = vmatprep.mubr.bf16.mxu0 0
        %1453 = vmatmul.mubr.bf16.gmra.mrb[0].mxu0 %v1291
        %v1454 = vpop.f32.mrb[0].mxu0
        %v1455 = vadd.f32 0.0, %v1454
        %v1456 = vpop.f32.mrb[0].mxu0
        %v1457 = vpop.f32.mrb[0].mxu0
        %v1458 = vadd.f32 0.0, %v1457
        %v1459 = vpop.f32.mrb[0].mxu0
        %1460 = vmatprep.mubr.bf16.mxu0 0
        %1461 = vmatmul.mubr.bf16.gmra.mrb[0].mxu0 %v1292
        %v1462 = vpop.f32.mrb[0].mxu0
        %v1463 = vadd.f32 0.0, %v1462
        %v1464 = vpop.f32.mrb[0].mxu0
        %v1465 = vpop.f32.mrb[0].mxu0
        %v1466 = vadd.f32 0.0, %v1465
        %v1467 = vpop.f32.mrb[0].mxu0
        %1468 = vmatprep.mubr.bf16.mxu0 0
        %1469 = vmatmul.mubr.bf16.gmra.mrb[0].mxu0 %v1293
        %v1470 = vpop.f32.mrb[0].mxu0
        %v1471 = vadd.f32 0.0, %v1470
        %v1472 = vpop.f32.mrb[0].mxu0
        %v1473 = vpop.f32.mrb[0].mxu0
        %v1474 = vadd.f32 0.0, %v1473
        %v1475 = vpop.f32.mrb[0].mxu0
        %1476 = vmatprep.mubr.bf16.mxu0 0
        %1477 = vmatmul.mubr.bf16.gmra.mrb[0].mxu0 %v1294
        %v1478 = vpop.f32.mrb[0].mxu0
        %v1479 = vadd.f32 0.0, %v1478
        %v1480 = vpop.f32.mrb[0].mxu0
        %v1481 = vpop.f32.mrb[0].mxu0
        %v1482 = vadd.f32 0.0, %v1481
        %v1483 = vpop.f32.mrb[0].mxu0
        %1484 = vmatprep.mubr.bf16.mxu0 0
        %1485 = vmatmul.mubr.bf16.gmra.mrb[0].mxu0 %v1295
        %v1486 = vpop.f32.mrb[0].mxu0
        %v1487 = vadd.f32 0.0, %v1486
        %v1488 = vpop.f32.mrb[0].mxu0
        %v1489 = vpop.f32.mrb[0].mxu0
        %v1490 = vadd.f32 0.0, %v1489
        %v1491 = vpop.f32.mrb[0].mxu0
        %1492 = vmatprep.mubr.bf16.mxu0 0
        %1493 = vmatmul.mubr.bf16.gmra.mrb[0].mxu0 %v1296
        %v1494 = vpop.f32.mrb[0].mxu0
        %v1495 = vadd.f32 0.0, %v1494
        %v1496 = vpop.f32.mrb[0].mxu0
        %v1497 = vpop.f32.mrb[0].mxu0
        %v1498 = vadd.f32 0.0, %v1497
        %v1499 = vpop.f32.mrb[0].mxu0
        %1500 = vmatprep.mubr.bf16.mxu0 0
        %1501 = vmatmul.mubr.bf16.gmra.mrb[0].mxu0 %v1297
        %v1502 = vpop.f32.mrb[0].mxu0
        %v1503 = vadd.f32 0.0, %v1502
        %v1504 = vpop.f32.mrb[0].mxu0
        %v1505 = vpop.f32.mrb[0].mxu0
        %v1506 = vadd.f32 0.0, %v1505
        %v1507 = vpop.f32.mrb[0].mxu0
        %1508 = vmatprep.mubr.bf16.mxu0 0
        %1509 = vmatmul.mubr.bf16.gmra.mrb[0].mxu0 %v1298
        %v1510 = vpop.f32.mrb[0].mxu0
        %v1511 = vadd.f32 0.0, %v1510
        %v1512 = vpop.f32.mrb[0].mxu0
        %v1513 = vpop.f32.mrb[0].mxu0
        %v1514 = vadd.f32 0.0, %v1513
        %v1515 = vpop.f32.mrb[0].mxu0
        %1516 = vmatprep.mubr.bf16.mxu0 0
        %1517 = vmatmul.mubr.bf16.gmra.mrb[0].mxu0 %v1299
        %v1518 = vpop.f32.mrb[0].mxu0
        %v1519 = vadd.f32 0.0, %v1518
        %v1520 = vpop.f32.mrb[0].mxu0
        %v1521 = vpop.f32.mrb[0].mxu0
        %v1522 = vadd.f32 0.0, %v1521
        %v1523 = vpop.f32.mrb[0].mxu0
        %1524 = vdwg.mxu0
        %v1525 = vadd.f32 %v1252, %v1399
        %v1526 = vadd.f32 %v1253, %v1402
        %v1527 = vadd.f32 %v1254, %v1407
        %v1528 = vadd.f32 %v1255, %v1410
        %v1529 = vadd.f32 %v1256, %v1415
        %v1530 = vadd.f32 %v1257, %v1418
        %v1531 = vadd.f32 %v1258, %v1423
        %v1532 = vadd.f32 %v1259, %v1426
        %v1533 = vadd.f32 %v1260, %v1431
        %v1534 = vadd.f32 %v1261, %v1434
        %v1535 = vadd.f32 %v1262, %v1439
        %v1536 = vadd.f32 %v1263, %v1442
        %v1537 = vadd.f32 %v1264, %v1447
        %v1538 = vadd.f32 %v1265, %v1450
        %v1539 = vadd.f32 %v1266, %v1455
        %v1540 = vadd.f32 %v1267, %v1458
        %v1541 = vadd.f32 %v1268, %v1463
        %v1542 = vadd.f32 %v1269, %v1466
        %v1543 = vadd.f32 %v1270, %v1471
        %v1544 = vadd.f32 %v1271, %v1474
        %v1545 = vadd.f32 %v1272, %v1479
        %v1546 = vadd.f32 %v1273, %v1482
        %v1547 = vadd.f32 %v1274, %v1487
        %v1548 = vadd.f32 %v1275, %v1490
        %v1549 = vadd.f32 %v1276, %v1495
        %v1550 = vadd.f32 %v1277, %v1498
        %v1551 = vadd.f32 %v1278, %v1503
        %v1552 = vadd.f32 %v1279, %v1506
        %v1553 = vadd.f32 %v1280, %v1511
        %v1554 = vadd.f32 %v1281, %v1514
        %v1555 = vadd.f32 %v1282, %v1519
        %v1556 = vadd.f32 %v1283, %v1522
        %1557 = vst [vmem:[#allocation3] sm:$0xff] %v1525
        %1558 = vst [vmem:[#allocation3 + $0x8] sm:$0xff] %v1526
        %1559 = vst [vmem:[#allocation3 + $0x10] sm:$0xff] %v1527
        %1560 = vst [vmem:[#allocation3 + $0x18] sm:$0xff] %v1528
        %1561 = vst [vmem:[#allocation3 + $0x20] sm:$0xff] %v1529
        %1562 = vst [vmem:[#allocation3 + $0x28] sm:$0xff] %v1530
        %1563 = vst [vmem:[#allocation3 + $0x30] sm:$0xff] %v1531
        %1564 = vst [vmem:[#allocation3 + $0x38] sm:$0xff] %v1532
        %1565 = vst [vmem:[#allocation3 + $0x40] sm:$0xff] %v1533
        %1566 = vst [vmem:[#allocation3 + $0x48] sm:$0xff] %v1534
        %1567 = vst [vmem:[#allocation3 + $0x50] sm:$0xff] %v1535
        %1568 = vst [vmem:[#allocation3 + $0x58] sm:$0xff] %v1536
        %1569 = vst [vmem:[#allocation3 + $0x60] sm:$0xff] %v1537
        %1570 = vst [vmem:[#allocation3 + $0x68] sm:$0xff] %v1538
        %1571 = vst [vmem:[#allocation3 + $0x70] sm:$0xff] %v1539
        %1572 = vst [vmem:[#allocation3 + $0x78] sm:$0xff] %v1540
        %1573 = vst [vmem:[#allocation3 + $0x80] sm:$0xff] %v1541
        %1574 = vst [vmem:[#allocation3 + $0x88] sm:$0xff] %v1542
        %1575 = vst [vmem:[#allocation3 + $0x90] sm:$0xff] %v1543
        %1576 = vst [vmem:[#allocation3 + $0x98] sm:$0xff] %v1544
        %1577 = vst [vmem:[#allocation3 + $0xa0] sm:$0xff] %v1545
        %1578 = vst [vmem:[#allocation3 + $0xa8] sm:$0xff] %v1546
        %1579 = vst [vmem:[#allocation3 + $0xb0] sm:$0xff] %v1547
        %1580 = vst [vmem:[#allocation3 + $0xb8] sm:$0xff] %v1548
        %1581 = vst [vmem:[#allocation3 + $0xc0] sm:$0xff] %v1549
        %1582 = vst [vmem:[#allocation3 + $0xc8] sm:$0xff] %v1550
        %1583 = vst [vmem:[#allocation3 + $0xd0] sm:$0xff] %v1551
        %1584 = vst [vmem:[#allocation3 + $0xd8] sm:$0xff] %v1552
        %1585 = vst [vmem:[#allocation3 + $0xe0] sm:$0xff] %v1553
        %1586 = vst [vmem:[#allocation3 + $0xe8] sm:$0xff] %v1554
        %1587 = vst [vmem:[#allocation3 + $0xf0] sm:$0xff] %v1555
        %1588 = vst [vmem:[#allocation3 + $0xf8] sm:$0xff] %v1556
        %p1589 = scmp.eq.s32.totalorder %s25, 1
        // Predicated region
        $region90: #{feed_forward.1} parent=80 // pred_check
          %p1590 = pneg %p1589
        $region91: #{feed_forward.1} parent=80 // pred_check_branch
          %1592 = sbr.rel (%p1590) target = $region93
        $region92: #{feed_forward.1} parent=80 // pred_region
          %v1593 = vld [vmem:[#allocation3] sm:$0xff]
          %v1594 = vld [vmem:[#allocation3 + $0x8] sm:$0xff]
          %v1595 = vld [vmem:[#allocation3 + $0x10] sm:$0xff]
          %v1596 = vld [vmem:[#allocation3 + $0x18] sm:$0xff]
          %v1597 = vld [vmem:[#allocation3 + $0x20] sm:$0xff]
          %v1598 = vld [vmem:[#allocation3 + $0x28] sm:$0xff]
          %v1599 = vld [vmem:[#allocation3 + $0x30] sm:$0xff]
          %v1600 = vld [vmem:[#allocation3 + $0x38] sm:$0xff]
          %v1601 = vld [vmem:[#allocation3 + $0x40] sm:$0xff]
          %v1602 = vld [vmem:[#allocation3 + $0x48] sm:$0xff]
          %v1603 = vld [vmem:[#allocation3 + $0x50] sm:$0xff]
          %v1604 = vld [vmem:[#allocation3 + $0x58] sm:$0xff]
          %v1605 = vld [vmem:[#allocation3 + $0x60] sm:$0xff]
          %v1606 = vld [vmem:[#allocation3 + $0x68] sm:$0xff]
          %v1607 = vld [vmem:[#allocation3 + $0x70] sm:$0xff]
          %v1608 = vld [vmem:[#allocation3 + $0x78] sm:$0xff]
          %v1609 = vld [vmem:[#allocation3 + $0x80] sm:$0xff]
          %v1610 = vld [vmem:[#allocation3 + $0x88] sm:$0xff]
          %v1611 = vld [vmem:[#allocation3 + $0x90] sm:$0xff]
          %v1612 = vld [vmem:[#allocation3 + $0x98] sm:$0xff]
          %v1613 = vld [vmem:[#allocation3 + $0xa0] sm:$0xff]
          %v1614 = vld [vmem:[#allocation3 + $0xa8] sm:$0xff]
          %v1615 = vld [vmem:[#allocation3 + $0xb0] sm:$0xff]
          %v1616 = vld [vmem:[#allocation3 + $0xb8] sm:$0xff]
          %v1617 = vld [vmem:[#allocation3 + $0xc0] sm:$0xff]
          %v1618 = vld [vmem:[#allocation3 + $0xc8] sm:$0xff]
          %v1619 = vld [vmem:[#allocation3 + $0xd0] sm:$0xff]
          %v1620 = vld [vmem:[#allocation3 + $0xd8] sm:$0xff]
          %v1621 = vld [vmem:[#allocation3 + $0xe0] sm:$0xff]
          %v1622 = vld [vmem:[#allocation3 + $0xe8] sm:$0xff]
          %v1623 = vld [vmem:[#allocation3 + $0xf0] sm:$0xff]
          %v1624 = vld [vmem:[#allocation3 + $0xf8] sm:$0xff]
          %v1625 = vld [vmem:[%s5] sm:$0x1]
          %v1627 = vlaneseq
          %v1628 = vshrl.u32 %v1627, 7
          %v1629 = vsub.s32 0, %v1628
          %v1630 = vrot.slane %v1625, %v1629
          %v1632 = vadd.f32 %v1593, %v1630
          %v1633 = vadd.f32 %v1594, %v1630
          %v1634 = vadd.f32 %v1595, %v1630
          %v1635 = vadd.f32 %v1596, %v1630
          %v1636 = vadd.f32 %v1597, %v1630
          %v1637 = vadd.f32 %v1598, %v1630
          %v1638 = vadd.f32 %v1599, %v1630
          %v1639 = vadd.f32 %v1600, %v1630
          %v1640 = vadd.f32 %v1601, %v1630
          %v1641 = vadd.f32 %v1602, %v1630
          %v1642 = vadd.f32 %v1603, %v1630
          %v1643 = vadd.f32 %v1604, %v1630
          %v1644 = vadd.f32 %v1605, %v1630
          %v1645 = vadd.f32 %v1606, %v1630
          %v1646 = vadd.f32 %v1607, %v1630
          %v1647 = vadd.f32 %v1608, %v1630
          %v1648 = vadd.f32 %v1609, %v1630
          %v1649 = vadd.f32 %v1610, %v1630
          %v1650 = vadd.f32 %v1611, %v1630
          %v1651 = vadd.f32 %v1612, %v1630
          %v1652 = vadd.f32 %v1613, %v1630
          %v1653 = vadd.f32 %v1614, %v1630
          %v1654 = vadd.f32 %v1615, %v1630
          %v1655 = vadd.f32 %v1616, %v1630
          %v1656 = vadd.f32 %v1617, %v1630
          %v1657 = vadd.f32 %v1618, %v1630
          %v1658 = vadd.f32 %v1619, %v1630
          %v1659 = vadd.f32 %v1620, %v1630
          %v1660 = vadd.f32 %v1621, %v1630
          %v1661 = vadd.f32 %v1622, %v1630
          %v1662 = vadd.f32 %v1623, %v1630
          %v1663 = vadd.f32 %v1624, %v1630
          %1664 = vst [vmem:[%s405] sm:$0xff] %v1632
          %1665 = vst [vmem:[%s405 + $0x8] sm:$0xff] %v1633
          %1666 = vst [vmem:[%s405 + $0x10] sm:$0xff] %v1634
          %1667 = vst [vmem:[%s405 + $0x18] sm:$0xff] %v1635
          %1668 = vst [vmem:[%s405 + $0x20] sm:$0xff] %v1636
          %1669 = vst [vmem:[%s405 + $0x28] sm:$0xff] %v1637
          %1670 = vst [vmem:[%s405 + $0x30] sm:$0xff] %v1638
          %1671 = vst [vmem:[%s405 + $0x38] sm:$0xff] %v1639
          %1672 = vst [vmem:[%s405 + $0x40] sm:$0xff] %v1640
          %1673 = vst [vmem:[%s405 + $0x48] sm:$0xff] %v1641
          %1674 = vst [vmem:[%s405 + $0x50] sm:$0xff] %v1642
          %1675 = vst [vmem:[%s405 + $0x58] sm:$0xff] %v1643
          %1676 = vst [vmem:[%s405 + $0x60] sm:$0xff] %v1644
          %1677 = vst [vmem:[%s405 + $0x68] sm:$0xff] %v1645
          %1678 = vst [vmem:[%s405 + $0x70] sm:$0xff] %v1646
          %1679 = vst [vmem:[%s405 + $0x78] sm:$0xff] %v1647
          %1680 = vst [vmem:[%s405 + $0x80] sm:$0xff] %v1648
          %1681 = vst [vmem:[%s405 + $0x88] sm:$0xff] %v1649
          %1682 = vst [vmem:[%s405 + $0x90] sm:$0xff] %v1650
          %1683 = vst [vmem:[%s405 + $0x98] sm:$0xff] %v1651
          %1684 = vst [vmem:[%s405 + $0xa0] sm:$0xff] %v1652
          %1685 = vst [vmem:[%s405 + $0xa8] sm:$0xff] %v1653
          %1686 = vst [vmem:[%s405 + $0xb0] sm:$0xff] %v1654
          %1687 = vst [vmem:[%s405 + $0xb8] sm:$0xff] %v1655
          %1688 = vst [vmem:[%s405 + $0xc0] sm:$0xff] %v1656
          %1689 = vst [vmem:[%s405 + $0xc8] sm:$0xff] %v1657
          %1690 = vst [vmem:[%s405 + $0xd0] sm:$0xff] %v1658
          %1691 = vst [vmem:[%s405 + $0xd8] sm:$0xff] %v1659
          %1692 = vst [vmem:[%s405 + $0xe0] sm:$0xff] %v1660
          %1693 = vst [vmem:[%s405 + $0xe8] sm:$0xff] %v1661
          %1694 = vst [vmem:[%s405 + $0xf0] sm:$0xff] %v1662
          %1695 = vst [vmem:[%s405 + $0xf8] sm:$0xff] %v1663
        $region93: #{feed_forward.1} parent=80 // pred_fallthru
          _
        %s1696 = sand.u32 %s186, 1
        %s1697 = scalar_lea.sflag [#allocation6], %s1696
        %s1698 = sand.u32 %s186, 1
        %s1699 = smul.addr %s1698, 256
        %s1700 = scalar_lea.vmem [#allocation5], %s1699
        // Predicated region
        $region94: #{feed_forward.1} parent=80 // pred_check
          %p1701 = pneg %p196
        $region95: #{feed_forward.1} parent=80 // pred_check_branch
          %1703 = sbr.rel (%p1701) target = $region97
        $region96: #{feed_forward.1} parent=80 // pred_region
          %s1704 = smul.u32 32, %s24
          %s1706 = ssub.s32 4096, 4096
          %1707 = vsyncadd %s1697, %s1706
          %s1708 = smul.addr %s1704, 128
          %s1709 = scalar_lea.hbm %s6, %s1708
          %s1710 = sshll.u32 %s1700, 4
          %s1711 = int_to_ptr.vmem [resolvable:$true] %s1710
          %1716 = dma.vmem_to_hbm [thread:$0]  %s1711, 4096, %s1709, %s1697, 128, 128, 8
        $region97: #{feed_forward.1} parent=80 // pred_fallthru
          _
      $region81: #{feed_forward.1} parent=5 // pred_fallthru
        _
      %p1717 = scmp.le.s32.totalorder 2, %s15
      // Predicated region
      $region98: #{feed_forward.1} parent=5 // pred_check
        %p1718 = pneg %p1717
      $region99: #{feed_forward.1} parent=5 // pred_check_branch
        %1720 = sbr.rel (%p1718) target = $region101
      $region100: #{feed_forward.1} parent=5 // pred_region
        %s1721 = ssub.s32 %s15, 2
        // Predicated region
        $region102: #{feed_forward.1} parent=100 // pred_check
          %p1722 = pneg %p202
        $region103: #{feed_forward.1} parent=100 // pred_check_branch
          %1724 = sbr.rel (%p1722) target = $region105
        $region104: #{feed_forward.1} parent=100 // pred_region
          %s1725 = sand.u32 %s187, 1
          %s1726 = scalar_lea.sflag [#allocation6], %s1725
          %s1727 = sand.u32 %s187, 1
          %s1728 = smul.addr %s1727, 256
          %s1729 = scalar_lea.vmem [#allocation5], %s1728
          %1730 = dma.done %s1726, 4096
        $region105: #{feed_forward.1} parent=100 // pred_fallthru
          _
      $region101: #{feed_forward.1} parent=5 // pred_fallthru
        _
    $region6: #{feed_forward.1} parent=1 // loop_footer
      %s19 = sadd.s32 1, %s15
    $region7: #{feed_forward.1} parent=1 // loop_footer_branch
      %14 = sbr.rel target = $region3
    $region8: #{feed_forward.1} parent=1 // loop_exit
      _
    %1731 = vsyncpa [#allocation6], 1
    %s1732 = scalar_lea.sflag [#allocation6], 1
    %1733 = vsyncpa %s1732, 1

</llo_original>
